<compile_context>
chip_gen: v7x
topology: tpu7x:2x2x1
jax: 0.10.0
libtpu: 0.0.40
codegen_flags: <defaults>
</compile_context>

<pallas_src>
import jax
import jax.numpy as jnp
from jax.experimental import pallas as pl
from jax.experimental.pallas import tpu as pltpu

EPS = 1e-5


# --------------------------------------------------------------------------
# Kernels
# --------------------------------------------------------------------------
def _stats1_kernel(x_ref, w1t_ref, sh_ref, sh2_ref):
    # x_ref: (Nb, Cin, T)  w1t_ref: (Cmid, Cin)
    # sh_ref / sh2_ref: (1, Cmid, 1) per-image-group resident accumulators.
    @pl.when(pl.program_id(1) == 0)
    def _():
        sh_ref[...] = jnp.zeros_like(sh_ref)
        sh2_ref[...] = jnp.zeros_like(sh2_ref)

    w1t = w1t_ref[...]
    for b in range(x_ref.shape[0]):                       # static unroll, Nb small
        h = jnp.dot(w1t, x_ref[b], preferred_element_type=jnp.float32)  # (Cmid, T)
        sh_ref[...] += jnp.sum(h, axis=1, keepdims=True)[None]
        sh2_ref[...] += jnp.sum(h * h, axis=1, keepdims=True)[None]


def _stats2_kernel(x_ref, w1t_ref, sc1_ref, b1_ref, w2t_ref, sy_ref, sy2_ref):
    # Recompute h, apply folded BN1 + ReLU, y = W2ᵀ h; accumulate Σy, Σy².
    # y is intentionally NOT written to HBM (recomputed again in sweep C).
    @pl.when(pl.program_id(1) == 0)
    def _():
        sy_ref[...] = jnp.zeros_like(sy_ref)
        sy2_ref[...] = jnp.zeros_like(sy2_ref)

    w1t = w1t_ref[...]
    w2t = w2t_ref[...]
    sc1 = sc1_ref[...]
    b1 = b1_ref[...]
    for b in range(x_ref.shape[0]):
        h = jnp.dot(w1t, x_ref[b], preferred_element_type=jnp.float32)   # (Cmid, T)
        h = jnp.maximum(h * sc1 + b1, 0.0)                               # BN1 + ReLU
        y = jnp.dot(w2t, h, preferred_element_type=jnp.float32)          # (Cout, T)
        sy_ref[...] += jnp.sum(y, axis=1, keepdims=True)[None]
        sy2_ref[...] += jnp.sum(y * y, axis=1, keepdims=True)[None]


def _final_kernel(x_ref, w1t_ref, sc1_ref, b1_ref, w2t_ref, sc2_ref, b2_ref, o_ref):
    # Full recompute + folded BN2; single lane-dense write of the output tile.
    w1t = w1t_ref[...]
    w2t = w2t_ref[...]
    sc1 = sc1_ref[...]
    b1 = b1_ref[...]
    sc2 = sc2_ref[...]
    b2 = b2_ref[...]
    for b in range(x_ref.shape[0]):
        h = jnp.dot(w1t, x_ref[b], preferred_element_type=jnp.float32)
        h = jnp.maximum(h * sc1 + b1, 0.0)
        y = jnp.dot(w2t, h, preferred_element_type=jnp.float32)
        o_ref[b] = (y * sc2 + b2).astype(o_ref.dtype)


# --------------------------------------------------------------------------
# Tiling helpers
# --------------------------------------------------------------------------
def _pick_tile(hw, max_tile=16384):
    """Largest multiple of 128 (<= max_tile) dividing hw, else hw itself."""
    cap = min(hw, max_tile)
    for cand in range(cap - cap % 128, 0, -128):
        if hw % cand == 0:
            return cand
    return hw  # full row: always a legal block (equals the full array dim)


def _pick_image_block(n, cin, cout, t, hw):
    """Block several images per step when a whole image fits in one tile, while
    keeping >= 2 steps on the parallel image axis (v7x dual-TC needs work)."""
    if t != hw:
        return 1
    budget = 4 << 20  # ~4 MiB per-step payload
    best = 1
    for nb in range(1, n + 1):
        if n % nb:
            continue
        if n >= 2 and n // nb < 2:
            continue
        if nb * (cin + cout) * t * 4 <= budget:
            best = nb
    return best


def _vmem_limit_bytes(nb, cin, cmid, cout, t):
    # double-buffered tiles + intermediates + weights, with generous slack;
    # clamp to [32 MiB, 48 MiB] so it is valid on v5e/v6e (128 MiB physical)
    # and v7x (64 MiB physical, 32 MiB default scoped).
    tile = 4 * nb * t * (cin + cmid + cout)
    est = 4 * tile + (2 << 20)
    return int(min(max(est, 32 << 20), 48 << 20))


# --------------------------------------------------------------------------
# Wrapper
# --------------------------------------------------------------------------
def mlp2d_forward(x_nchw, w1, gamma1, beta1, w2):
    """x_nchw: (N, Cin, H, W) f32; w1: (Cin, Cmid); w2: (Cmid, Cout).
    Returns (N, Cout, H, W) f32, matching MLP2d.forward in training mode."""
    N, Cin, H, W = x_nchw.shape
    Cmid = w1.shape[1]
    Cout = w2.shape[1]
    HW = H * W
    M = N * HW

    T = _pick_tile(HW)
    Nb = _pick_image_block(N, Cin, Cout, T, HW)
    grid = (N // Nb, HW // T)
    vmem = _vmem_limit_bytes(Nb, Cin, Cmid, Cout, T)

    x3 = x_nchw.reshape(N, Cin, HW)          # free reshape (no transpose/copy)
    w1t = jnp.transpose(w1)                  # (Cmid, Cin)  -- tiny, one-off
    w2t = jnp.transpose(w2)                  # (Cout, Cmid) -- tiny, one-off

    x_spec = pl.BlockSpec((Nb, Cin, T), lambda n, t: (n, 0, t))
    w1t_spec = pl.BlockSpec((Cmid, Cin), lambda n, t: (0, 0))
    w2t_spec = pl.BlockSpec((Cout, Cmid), lambda n, t: (0, 0))
    vec_mid = pl.BlockSpec((Cmid, 1), lambda n, t: (0, 0))
    vec_out = pl.BlockSpec((Cout, 1), lambda n, t: (0, 0))
    acc_mid = pl.BlockSpec((1, Cmid, 1), lambda n, t: (n, 0, 0))
    acc_out = pl.BlockSpec((1, Cout, 1), lambda n, t: (n, 0, 0))

    stats_params = pltpu.CompilerParams(
        dimension_semantics=("parallel", "arbitrary"), vmem_limit_bytes=vmem)
    final_params = pltpu.CompilerParams(
        dimension_semantics=("parallel", "parallel"), vmem_limit_bytes=vmem)

    # ---- Sweep A: global statistics of h = W1ᵀ x ----------------------------
    sum_h, sum_h2 = pl.pallas_call(
        _stats1_kernel,
        out_shape=(jax.ShapeDtypeStruct((N // Nb, Cmid, 1), jnp.float32),
                   jax.ShapeDtypeStruct((N // Nb, Cmid, 1), jnp.float32)),
        grid=grid,
        in_specs=[x_spec, w1t_spec],
        out_specs=(acc_mid, acc_mid),
        compiler_params=stats_params,
    )(x3, w1t)

    sum_h = jnp.sum(sum_h, axis=0)                        # combine per-image partials
    sum_h2 = jnp.sum(sum_h2, axis=0)
    mean1 = sum_h / M
    var1 = jnp.maximum(sum_h2 / M - mean1 * mean1, 0.0)   # biased variance
    scale1 = gamma1.reshape(Cmid, 1) * jax.lax.rsqrt(var1 + EPS)
    bias1 = beta1.reshape(Cmid, 1) - mean1 * scale1

    # ---- Sweep B: global statistics of y = W2ᵀ relu(BN1(h)) (no y write) ----
    sum_y, sum_y2 = pl.pallas_call(
        _stats2_kernel,
        out_shape=(jax.ShapeDtypeStruct((N // Nb, Cout, 1), jnp.float32),
                   jax.ShapeDtypeStruct((N // Nb, Cout, 1), jnp.float32)),
        grid=grid,
        in_specs=[x_spec, w1t_spec, vec_mid, vec_mid, w2t_spec],
        out_specs=(acc_out, acc_out),
        compiler_params=stats_params,
    )(x3, w1t, scale1, bias1, w2t)

    sum_y = jnp.sum(sum_y, axis=0)
    sum_y2 = jnp.sum(sum_y2, axis=0)
    mean2 = sum_y / M
    var2 = jnp.maximum(sum_y2 / M - mean2 * mean2, 0.0)   # biased variance
    scale2 = jax.lax.rsqrt(var2 + EPS)                    # affine=False
    bias2 = -mean2 * scale2

    # ---- Sweep C: recompute y, apply BN2, single lane-dense output write ----
    out3 = pl.pallas_call(
        _final_kernel,
        out_shape=jax.ShapeDtypeStruct((N, Cout, HW), jnp.float32),
        grid=grid,
        in_specs=[x_spec, w1t_spec, vec_mid, vec_mid, w2t_spec, vec_out, vec_out],
        out_specs=pl.BlockSpec((Nb, Cout, T), lambda n, t: (n, 0, t)),
        compiler_params=final_params,
    )(x3, w1t, scale1, bias1, w2t, scale2, bias2)

    return out3.reshape(N, Cout, H, W)       # free reshape back to NCHW


# --------------------------------------------------------------------------
# Pure-JAX reference (same semantics) for sanity checking
# --------------------------------------------------------------------------
def _reference(x_nchw, w1, gamma1, beta1, w2):
    N, Cin, H, W = x_nchw.shape
    x2d = jnp.transpose(x_nchw, (0, 2, 3, 1)).reshape(-1, Cin)
    h = x2d @ w1
    m1 = h.mean(0, keepdims=True)
    v1 = ((h - m1) ** 2).mean(0, keepdims=True)
    h = (h - m1) / jnp.sqrt(v1 + EPS) * gamma1 + beta1
    h = jnp.maximum(h, 0.0)
    y = h @ w2
    m2 = y.mean(0, keepdims=True)
    v2 = ((y - m2) ** 2).mean(0, keepdims=True)
    y = (y - m2) / jnp.sqrt(v2 + EPS)
    return jnp.transpose(y.reshape(N, H, W, -1), (0, 3, 1, 2))


if __name__ == "__main__":
    # Small shapes consistent with the module: in_dim=4, inner_dim=32, out_dim=16
    N, Cin, H, W = 2, 4, 16, 16
    Cmid, Cout = 32, 16

    key = jax.random.PRNGKey(0)
    kx, k1, kg, kb, k2 = jax.random.split(key, 5)

    x = jax.random.normal(kx, (N, Cin, H, W), dtype=jnp.float32)
    # conv1x1 weights stored as (Cin, Cout); synthetic BN1 affine params.
    w1 = jax.random.normal(k1, (Cin, Cmid), dtype=jnp.float32) * (1.0 / jnp.sqrt(Cin))
    gamma1 = 1.0 + 0.1 * jax.random.normal(kg, (Cmid,), dtype=jnp.float32)
    beta1 = 0.1 * jax.random.normal(kb, (Cmid,), dtype=jnp.float32)
    w2 = jax.random.normal(k2, (Cmid, Cout), dtype=jnp.float32) * (1.0 / jnp.sqrt(Cmid))

    fwd = jax.jit(mlp2d_forward)
    out = jax.block_until_ready(fwd(x, w1, gamma1, beta1, w2))

    ref = _reference(x, w1, gamma1, beta1, w2)
    assert out.shape == (N, Cout, H, W)
    assert jnp.allclose(out, ref, atol=2e-4, rtol=2e-4)

    print("KERNEL_OK")
</pallas_src>

<mosaic_0001>
module attributes {stable_mosaic.version = 11 : i64} {
  func.func @_stats1_kernel(%arg0: i32, %arg1: i32, %arg2: memref<1x4x256xf32, #tpu.memory_space<vmem>>, %arg3: memref<32x4xf32, #tpu.memory_space<vmem>>, %arg4: memref<1x32x1xf32, #tpu.memory_space<vmem>>, %arg5: memref<1x32x1xf32, #tpu.memory_space<vmem>>) attributes {dimension_semantics = [#tpu.dimension_semantics<parallel>, #tpu.dimension_semantics<arbitrary>], iteration_bounds = array<i64: 2, 1>, scalar_prefetch = 0 : i64, scratch_operands = 0 : i64, tpu.core_type = #tpu.core_type<tc>, window_params = [{transform_indices = @transform_0, window_bounds = array<i64: 1, 4, 256>}, {pipeline_mode = #tpu.pipeline_mode<synchronous>, transform_indices = @transform_1, window_bounds = array<i64: 32, 4>}, {transform_indices = @transform_2, window_bounds = array<i64: 1, 32, 1>}, {transform_indices = @transform_3, window_bounds = array<i64: 1, 32, 1>}]} {
    %c0_i32 = arith.constant 0 : i32
    %0 = arith.cmpi eq, %arg1, %c0_i32 : i32
    %1 = arith.extui %0 : i1 to i32
    %c0_i32_0 = arith.constant 0 : i32
    %2 = arith.cmpi ne, %1, %c0_i32_0 : i32
    scf.if %2 {
      %cst_19 = arith.constant 0.000000e+00 : f32
      %20 = vector.broadcast %cst_19 : f32 to vector<1x32x1xf32>
      %c0_20 = arith.constant 0 : index
      %c0_21 = arith.constant 0 : index
      %c0_22 = arith.constant 0 : index
      %21 = vector.load %arg4[%c0_20, %c0_21, %c0_22] : memref<1x32x1xf32, #tpu.memory_space<vmem>>, vector<1x32x1xf32>
      tpu.vector_store %arg4[%c0_20, %c0_21, %c0_22], %20 {strides = array<i32>} : memref<1x32x1xf32, #tpu.memory_space<vmem>>, vector<1x32x1xf32>,
      %cst_23 = arith.constant 0.000000e+00 : f32
      %22 = vector.broadcast %cst_23 : f32 to vector<1x32x1xf32>
      %c0_24 = arith.constant 0 : index
      %c0_25 = arith.constant 0 : index
      %c0_26 = arith.constant 0 : index
      %23 = vector.load %arg5[%c0_24, %c0_25, %c0_26] : memref<1x32x1xf32, #tpu.memory_space<vmem>>, vector<1x32x1xf32>
      tpu.vector_store %arg5[%c0_24, %c0_25, %c0_26], %22 {strides = array<i32>} : memref<1x32x1xf32, #tpu.memory_space<vmem>>, vector<1x32x1xf32>,
    } else {
    }
    %c0 = arith.constant 0 : index
    %c0_1 = arith.constant 0 : index
    %3 = vector.load %arg3[%c0, %c0_1] : memref<32x4xf32, #tpu.memory_space<vmem>>, vector<32x4xf32>
    %c0_2 = arith.constant 0 : index
    %c0_3 = arith.constant 0 : index
    %c0_4 = arith.constant 0 : index
    %4 = vector.load %arg2[%c0_2, %c0_3, %c0_4] : memref<1x4x256xf32, #tpu.memory_space<vmem>>, vector<1x4x256xf32>
    %5 = vector.shape_cast %4 : vector<1x4x256xf32> to vector<4x256xf32>
    %cst = arith.constant dense<0.000000e+00> : vector<32x256xf32>
    %6 = tpu.matmul %3, %5, %cst {dimension_numbers = #tpu.dot_dimension_numbers<[1], [0], [0], [1], [0, 0, 1, 1], [], []>} : vector<32x4xf32>, vector<4x256xf32>, vector<32x256xf32> -> vector<32x256xf32>
    %c0_5 = arith.constant 0 : index
    %c0_6 = arith.constant 0 : index
    %c0_7 = arith.constant 0 : index
    %7 = vector.load %arg4[%c0_5, %c0_6, %c0_7] : memref<1x32x1xf32, #tpu.memory_space<vmem>>, vector<1x32x1xf32>
    %cst_8 = arith.constant dense<0.000000e+00> : vector<32xf32>
    %8 = vector.multi_reduction <add>, %6, %cst_8 [1] : vector<32x256xf32> to vector<32xf32>
    %9 = vector.shape_cast %8 : vector<32xf32> to vector<32x1xf32>
    %10 = vector.shape_cast %9 : vector<32x1xf32> to vector<1x32x1xf32>
    %11 = arith.addf %7, %10 : vector<1x32x1xf32>
    %c0_9 = arith.constant 0 : index
    %c0_10 = arith.constant 0 : index
    %c0_11 = arith.constant 0 : index
    %12 = vector.load %arg4[%c0_9, %c0_10, %c0_11] : memref<1x32x1xf32, #tpu.memory_space<vmem>>, vector<1x32x1xf32>
    tpu.vector_store %arg4[%c0_9, %c0_10, %c0_11], %11 {strides = array<i32>} : memref<1x32x1xf32, #tpu.memory_space<vmem>>, vector<1x32x1xf32>,
    %c0_12 = arith.constant 0 : index
    %c0_13 = arith.constant 0 : index
    %c0_14 = arith.constant 0 : index
    %13 = vector.load %arg5[%c0_12, %c0_13, %c0_14] : memref<1x32x1xf32, #tpu.memory_space<vmem>>, vector<1x32x1xf32>
    %14 = arith.mulf %6, %6 : vector<32x256xf32>
    %cst_15 = arith.constant dense<0.000000e+00> : vector<32xf32>
    %15 = vector.multi_reduction <add>, %14, %cst_15 [1] : vector<32x256xf32> to vector<32xf32>
    %16 = vector.shape_cast %15 : vector<32xf32> to vector<32x1xf32>
    %17 = vector.shape_cast %16 : vector<32x1xf32> to vector<1x32x1xf32>
    %18 = arith.addf %13, %17 : vector<1x32x1xf32>
    %c0_16 = arith.constant 0 : index
    %c0_17 = arith.constant 0 : index
    %c0_18 = arith.constant 0 : index
    %19 = vector.load %arg5[%c0_16, %c0_17, %c0_18] : memref<1x32x1xf32, #tpu.memory_space<vmem>>, vector<1x32x1xf32>
    tpu.vector_store %arg5[%c0_16, %c0_17, %c0_18], %18 {strides = array<i32>} : memref<1x32x1xf32, #tpu.memory_space<vmem>>, vector<1x32x1xf32>,
    return
  }
  func.func @transform_0(%arg0: i32, %arg1: i32) -> (i32, i32, i32) {
    %c0_i32 = arith.constant 0 : i32
    %c0_i32_0 = arith.constant 0 : i32
    return %arg0, %c0_i32, %arg1 : i32, i32, i32
  }
  func.func @transform_1(%arg0: i32, %arg1: i32) -> (i32, i32) {
    %c0_i32 = arith.constant 0 : i32
    %c0_i32_0 = arith.constant 0 : i32
    %c0_i32_1 = arith.constant 0 : i32
    return %c0_i32, %c0_i32_0 : i32, i32
  }
  func.func @transform_2(%arg0: i32, %arg1: i32) -> (i32, i32, i32) {
    %c0_i32 = arith.constant 0 : i32
    %c0_i32_0 = arith.constant 0 : i32
    %c0_i32_1 = arith.constant 0 : i32
    return %arg0, %c0_i32, %c0_i32_0 : i32, i32, i32
  }
  func.func @transform_3(%arg0: i32, %arg1: i32) -> (i32, i32, i32) {
    %c0_i32 = arith.constant 0 : i32
    %c0_i32_0 = arith.constant 0 : i32
    %c0_i32_1 = arith.constant 0 : i32
    return %arg0, %c0_i32, %c0_i32_0 : i32, i32, i32
  }
}

module attributes {stable_mosaic.version = 11 : i64} {
  func.func @_stats2_kernel(%arg0: i32, %arg1: i32, %arg2: memref<1x4x256xf32, #tpu.memory_space<vmem>>, %arg3: memref<32x4xf32, #tpu.memory_space<vmem>>, %arg4: memref<32x1xf32, #tpu.memory_space<vmem>>, %arg5: memref<32x1xf32, #tpu.memory_space<vmem>>, %arg6: memref<16x32xf32, #tpu.memory_space<vmem>>, %arg7: memref<1x16x1xf32, #tpu.memory_space<vmem>>, %arg8: memref<1x16x1xf32, #tpu.memory_space<vmem>>) attributes {dimension_semantics = [#tpu.dimension_semantics<parallel>, #tpu.dimension_semantics<arbitrary>], iteration_bounds = array<i64: 2, 1>, scalar_prefetch = 0 : i64, scratch_operands = 0 : i64, tpu.core_type = #tpu.core_type<tc>, window_params = [{transform_indices = @transform_0, window_bounds = array<i64: 1, 4, 256>}, {pipeline_mode = #tpu.pipeline_mode<synchronous>, transform_indices = @transform_1, window_bounds = array<i64: 32, 4>}, {pipeline_mode = #tpu.pipeline_mode<synchronous>, transform_indices = @transform_2, window_bounds = array<i64: 32, 1>}, {pipeline_mode = #tpu.pipeline_mode<synchronous>, transform_indices = @transform_3, window_bounds = array<i64: 32, 1>}, {pipeline_mode = #tpu.pipeline_mode<synchronous>, transform_indices = @transform_4, window_bounds = array<i64: 16, 32>}, {transform_indices = @transform_5, window_bounds = array<i64: 1, 16, 1>}, {transform_indices = @transform_6, window_bounds = array<i64: 1, 16, 1>}]} {
    %c0_i32 = arith.constant 0 : i32
    %0 = arith.cmpi eq, %arg1, %c0_i32 : i32
    %1 = arith.extui %0 : i1 to i32
    %c0_i32_0 = arith.constant 0 : i32
    %2 = arith.cmpi ne, %1, %c0_i32_0 : i32
    scf.if %2 {
      %cst_27 = arith.constant 0.000000e+00 : f32
      %30 = vector.broadcast %cst_27 : f32 to vector<1x16x1xf32>
      %c0_28 = arith.constant 0 : index
      %c0_29 = arith.constant 0 : index
      %c0_30 = arith.constant 0 : index
      %31 = vector.load %arg7[%c0_28, %c0_29, %c0_30] : memref<1x16x1xf32, #tpu.memory_space<vmem>>, vector<1x16x1xf32>
      tpu.vector_store %arg7[%c0_28, %c0_29, %c0_30], %30 {strides = array<i32>} : memref<1x16x1xf32, #tpu.memory_space<vmem>>, vector<1x16x1xf32>,
      %cst_31 = arith.constant 0.000000e+00 : f32
      %32 = vector.broadcast %cst_31 : f32 to vector<1x16x1xf32>
      %c0_32 = arith.constant 0 : index
      %c0_33 = arith.constant 0 : index
      %c0_34 = arith.constant 0 : index
      %33 = vector.load %arg8[%c0_32, %c0_33, %c0_34] : memref<1x16x1xf32, #tpu.memory_space<vmem>>, vector<1x16x1xf32>
      tpu.vector_store %arg8[%c0_32, %c0_33, %c0_34], %32 {strides = array<i32>} : memref<1x16x1xf32, #tpu.memory_space<vmem>>, vector<1x16x1xf32>,
    } else {
    }
    %c0 = arith.constant 0 : index
    %c0_1 = arith.constant 0 : index
    %3 = vector.load %arg3[%c0, %c0_1] : memref<32x4xf32, #tpu.memory_space<vmem>>, vector<32x4xf32>
    %c0_2 = arith.constant 0 : index
    %c0_3 = arith.constant 0 : index
    %4 = vector.load %arg6[%c0_2, %c0_3] : memref<16x32xf32, #tpu.memory_space<vmem>>, vector<16x32xf32>
    %c0_4 = arith.constant 0 : index
    %c0_5 = arith.constant 0 : index
    %5 = vector.load %arg4[%c0_4, %c0_5] : memref<32x1xf32, #tpu.memory_space<vmem>>, vector<32x1xf32>
    %c0_6 = arith.constant 0 : index
    %c0_7 = arith.constant 0 : index
    %6 = vector.load %arg5[%c0_6, %c0_7] : memref<32x1xf32, #tpu.memory_space<vmem>>, vector<32x1xf32>
    %c0_8 = arith.constant 0 : index
    %c0_9 = arith.constant 0 : index
    %c0_10 = arith.constant 0 : index
    %7 = vector.load %arg2[%c0_8, %c0_9, %c0_10] : memref<1x4x256xf32, #tpu.memory_space<vmem>>, vector<1x4x256xf32>
    %8 = vector.shape_cast %7 : vector<1x4x256xf32> to vector<4x256xf32>
    %cst = arith.constant dense<0.000000e+00> : vector<32x256xf32>
    %9 = tpu.matmul %3, %8, %cst {dimension_numbers = #tpu.dot_dimension_numbers<[1], [0], [0], [1], [0, 0, 1, 1], [], []>} : vector<32x4xf32>, vector<4x256xf32>, vector<32x256xf32> -> vector<32x256xf32>
    %10 = vector.broadcast %5 : vector<32x1xf32> to vector<32x256xf32>
    %11 = arith.mulf %9, %10 : vector<32x256xf32>
    %12 = vector.broadcast %6 : vector<32x1xf32> to vector<32x256xf32>
    %13 = arith.addf %11, %12 : vector<32x256xf32>
    %cst_11 = arith.constant 0.000000e+00 : f32
    %14 = vector.broadcast %cst_11 : f32 to vector<32x256xf32>
    %15 = arith.maximumf %13, %14 : vector<32x256xf32>
    %cst_12 = arith.constant dense<0.000000e+00> : vector<16x256xf32>
    %16 = tpu.matmul %4, %15, %cst_12 {dimension_numbers = #tpu.dot_dimension_numbers<[1], [0], [0], [1], [0, 0, 1, 1], [], []>} : vector<16x32xf32>, vector<32x256xf32>, vector<16x256xf32> -> vector<16x256xf32>
    %c0_13 = arith.constant 0 : index
    %c0_14 = arith.constant 0 : index
    %c0_15 = arith.constant 0 : index
    %17 = vector.load %arg7[%c0_13, %c0_14, %c0_15] : memref<1x16x1xf32, #tpu.memory_space<vmem>>, vector<1x16x1xf32>
    %cst_16 = arith.constant dense<0.000000e+00> : vector<16xf32>
    %18 = vector.multi_reduction <add>, %16, %cst_16 [1] : vector<16x256xf32> to vector<16xf32>
    %19 = vector.shape_cast %18 : vector<16xf32> to vector<16x1xf32>
    %20 = vector.shape_cast %19 : vector<16x1xf32> to vector<1x16x1xf32>
    %21 = arith.addf %17, %20 : vector<1x16x1xf32>
    %c0_17 = arith.constant 0 : index
    %c0_18 = arith.constant 0 : index
    %c0_19 = arith.constant 0 : index
    %22 = vector.load %arg7[%c0_17, %c0_18, %c0_19] : memref<1x16x1xf32, #tpu.memory_space<vmem>>, vector<1x16x1xf32>
    tpu.vector_store %arg7[%c0_17, %c0_18, %c0_19], %21 {strides = array<i32>} : memref<1x16x1xf32, #tpu.memory_space<vmem>>, vector<1x16x1xf32>,
    %c0_20 = arith.constant 0 : index
    %c0_21 = arith.constant 0 : index
    %c0_22 = arith.constant 0 : index
    %23 = vector.load %arg8[%c0_20, %c0_21, %c0_22] : memref<1x16x1xf32, #tpu.memory_space<vmem>>, vector<1x16x1xf32>
    %24 = arith.mulf %16, %16 : vector<16x256xf32>
    %cst_23 = arith.constant dense<0.000000e+00> : vector<16xf32>
    %25 = vector.multi_reduction <add>, %24, %cst_23 [1] : vector<16x256xf32> to vector<16xf32>
    %26 = vector.shape_cast %25 : vector<16xf32> to vector<16x1xf32>
    %27 = vector.shape_cast %26 : vector<16x1xf32> to vector<1x16x1xf32>
    %28 = arith.addf %23, %27 : vector<1x16x1xf32>
    %c0_24 = arith.constant 0 : index
    %c0_25 = arith.constant 0 : index
    %c0_26 = arith.constant 0 : index
    %29 = vector.load %arg8[%c0_24, %c0_25, %c0_26] : memref<1x16x1xf32, #tpu.memory_space<vmem>>, vector<1x16x1xf32>
    tpu.vector_store %arg8[%c0_24, %c0_25, %c0_26], %28 {strides = array<i32>} : memref<1x16x1xf32, #tpu.memory_space<vmem>>, vector<1x16x1xf32>,
    return
  }
  func.func @transform_0(%arg0: i32, %arg1: i32) -> (i32, i32, i32) {
    %c0_i32 = arith.constant 0 : i32
    %c0_i32_0 = arith.constant 0 : i32
    return %arg0, %c0_i32, %arg1 : i32, i32, i32
  }
  func.func @transform_1(%arg0: i32, %arg1: i32) -> (i32, i32) {
    %c0_i32 = arith.constant 0 : i32
    %c0_i32_0 = arith.constant 0 : i32
    %c0_i32_1 = arith.constant 0 : i32
    return %c0_i32, %c0_i32_0 : i32, i32
  }
  func.func @transform_2(%arg0: i32, %arg1: i32) -> (i32, i32) {
    %c0_i32 = arith.constant 0 : i32
    %c0_i32_0 = arith.constant 0 : i32
    %c0_i32_1 = arith.constant 0 : i32
    return %c0_i32, %c0_i32_0 : i32, i32
  }
  func.func @transform_3(%arg0: i32, %arg1: i32) -> (i32, i32) {
    %c0_i32 = arith.constant 0 : i32
    %c0_i32_0 = arith.constant 0 : i32
    %c0_i32_1 = arith.constant 0 : i32
    return %c0_i32, %c0_i32_0 : i32, i32
  }
  func.func @transform_4(%arg0: i32, %arg1: i32) -> (i32, i32) {
    %c0_i32 = arith.constant 0 : i32
    %c0_i32_0 = arith.constant 0 : i32
    %c0_i32_1 = arith.constant 0 : i32
    return %c0_i32, %c0_i32_0 : i32, i32
  }
  func.func @transform_5(%arg0: i32, %arg1: i32) -> (i32, i32, i32) {
    %c0_i32 = arith.constant 0 : i32
    %c0_i32_0 = arith.constant 0 : i32
    %c0_i32_1 = arith.constant 0 : i32
    return %arg0, %c0_i32, %c0_i32_0 : i32, i32, i32
  }
  func.func @transform_6(%arg0: i32, %arg1: i32) -> (i32, i32, i32) {
    %c0_i32 = arith.constant 0 : i32
    %c0_i32_0 = arith.constant 0 : i32
    %c0_i32_1 = arith.constant 0 : i32
    return %arg0, %c0_i32, %c0_i32_0 : i32, i32, i32
  }
}

module attributes {stable_mosaic.version = 11 : i64} {
  func.func @_final_kernel(%arg0: i32, %arg1: i32, %arg2: memref<1x4x256xf32, #tpu.memory_space<vmem>>, %arg3: memref<32x4xf32, #tpu.memory_space<vmem>>, %arg4: memref<32x1xf32, #tpu.memory_space<vmem>>, %arg5: memref<32x1xf32, #tpu.memory_space<vmem>>, %arg6: memref<16x32xf32, #tpu.memory_space<vmem>>, %arg7: memref<16x1xf32, #tpu.memory_space<vmem>>, %arg8: memref<16x1xf32, #tpu.memory_space<vmem>>, %arg9: memref<1x16x256xf32, #tpu.memory_space<vmem>>) attributes {dimension_semantics = [#tpu.dimension_semantics<parallel>, #tpu.dimension_semantics<parallel>], iteration_bounds = array<i64: 2, 1>, scalar_prefetch = 0 : i64, scratch_operands = 0 : i64, tpu.core_type = #tpu.core_type<tc>, window_params = [{transform_indices = @transform_0, window_bounds = array<i64: 1, 4, 256>}, {pipeline_mode = #tpu.pipeline_mode<synchronous>, transform_indices = @transform_1, window_bounds = array<i64: 32, 4>}, {pipeline_mode = #tpu.pipeline_mode<synchronous>, transform_indices = @transform_2, window_bounds = array<i64: 32, 1>}, {pipeline_mode = #tpu.pipeline_mode<synchronous>, transform_indices = @transform_3, window_bounds = array<i64: 32, 1>}, {pipeline_mode = #tpu.pipeline_mode<synchronous>, transform_indices = @transform_4, window_bounds = array<i64: 16, 32>}, {pipeline_mode = #tpu.pipeline_mode<synchronous>, transform_indices = @transform_5, window_bounds = array<i64: 16, 1>}, {pipeline_mode = #tpu.pipeline_mode<synchronous>, transform_indices = @transform_6, window_bounds = array<i64: 16, 1>}, {transform_indices = @transform_7, window_bounds = array<i64: 1, 16, 256>}]} {
    %c0 = arith.constant 0 : index
    %c0_0 = arith.constant 0 : index
    %0 = vector.load %arg3[%c0, %c0_0] : memref<32x4xf32, #tpu.memory_space<vmem>>, vector<32x4xf32>
    %c0_1 = arith.constant 0 : index
    %c0_2 = arith.constant 0 : index
    %1 = vector.load %arg6[%c0_1, %c0_2] : memref<16x32xf32, #tpu.memory_space<vmem>>, vector<16x32xf32>
    %c0_3 = arith.constant 0 : index
    %c0_4 = arith.constant 0 : index
    %2 = vector.load %arg4[%c0_3, %c0_4] : memref<32x1xf32, #tpu.memory_space<vmem>>, vector<32x1xf32>
    %c0_5 = arith.constant 0 : index
    %c0_6 = arith.constant 0 : index
    %3 = vector.load %arg5[%c0_5, %c0_6] : memref<32x1xf32, #tpu.memory_space<vmem>>, vector<32x1xf32>
    %c0_7 = arith.constant 0 : index
    %c0_8 = arith.constant 0 : index
    %4 = vector.load %arg7[%c0_7, %c0_8] : memref<16x1xf32, #tpu.memory_space<vmem>>, vector<16x1xf32>
    %c0_9 = arith.constant 0 : index
    %c0_10 = arith.constant 0 : index
    %5 = vector.load %arg8[%c0_9, %c0_10] : memref<16x1xf32, #tpu.memory_space<vmem>>, vector<16x1xf32>
    %c0_11 = arith.constant 0 : index
    %c0_12 = arith.constant 0 : index
    %c0_13 = arith.constant 0 : index
    %6 = vector.load %arg2[%c0_11, %c0_12, %c0_13] : memref<1x4x256xf32, #tpu.memory_space<vmem>>, vector<1x4x256xf32>
    %7 = vector.shape_cast %6 : vector<1x4x256xf32> to vector<4x256xf32>
    %cst = arith.constant dense<0.000000e+00> : vector<32x256xf32>
    %8 = tpu.matmul %0, %7, %cst {dimension_numbers = #tpu.dot_dimension_numbers<[1], [0], [0], [1], [0, 0, 1, 1], [], []>} : vector<32x4xf32>, vector<4x256xf32>, vector<32x256xf32> -> vector<32x256xf32>
    %9 = vector.broadcast %2 : vector<32x1xf32> to vector<32x256xf32>
    %10 = arith.mulf %8, %9 : vector<32x256xf32>
    %11 = vector.broadcast %3 : vector<32x1xf32> to vector<32x256xf32>
    %12 = arith.addf %10, %11 : vector<32x256xf32>
    %cst_14 = arith.constant 0.000000e+00 : f32
    %13 = vector.broadcast %cst_14 : f32 to vector<32x256xf32>
    %14 = arith.maximumf %12, %13 : vector<32x256xf32>
    %cst_15 = arith.constant dense<0.000000e+00> : vector<16x256xf32>
    %15 = tpu.matmul %1, %14, %cst_15 {dimension_numbers = #tpu.dot_dimension_numbers<[1], [0], [0], [1], [0, 0, 1, 1], [], []>} : vector<16x32xf32>, vector<32x256xf32>, vector<16x256xf32> -> vector<16x256xf32>
    %16 = vector.broadcast %4 : vector<16x1xf32> to vector<16x256xf32>
    %17 = arith.mulf %15, %16 : vector<16x256xf32>
    %18 = vector.broadcast %5 : vector<16x1xf32> to vector<16x256xf32>
    %19 = arith.addf %17, %18 : vector<16x256xf32>
    %c0_16 = arith.constant 0 : index
    %c0_17 = arith.constant 0 : index
    %c0_18 = arith.constant 0 : index
    %20 = vector.load %arg9[%c0_16, %c0_17, %c0_18] : memref<1x16x256xf32, #tpu.memory_space<vmem>>, vector<1x16x256xf32>
    %21 = vector.shape_cast %20 : vector<1x16x256xf32> to vector<16x256xf32>
    %22 = vector.shape_cast %19 : vector<16x256xf32> to vector<1x16x256xf32>
    tpu.vector_store %arg9[%c0_16, %c0_17, %c0_18], %22 {strides = array<i32>} : memref<1x16x256xf32, #tpu.memory_space<vmem>>, vector<1x16x256xf32>,
    return
  }
  func.func @transform_0(%arg0: i32, %arg1: i32) -> (i32, i32, i32) {
    %c0_i32 = arith.constant 0 : i32
    %c0_i32_0 = arith.constant 0 : i32
    return %arg0, %c0_i32, %arg1 : i32, i32, i32
  }
  func.func @transform_1(%arg0: i32, %arg1: i32) -> (i32, i32) {
    %c0_i32 = arith.constant 0 : i32
    %c0_i32_0 = arith.constant 0 : i32
    %c0_i32_1 = arith.constant 0 : i32
    return %c0_i32, %c0_i32_0 : i32, i32
  }
  func.func @transform_2(%arg0: i32, %arg1: i32) -> (i32, i32) {
    %c0_i32 = arith.constant 0 : i32
    %c0_i32_0 = arith.constant 0 : i32
    %c0_i32_1 = arith.constant 0 : i32
    return %c0_i32, %c0_i32_0 : i32, i32
  }
  func.func @transform_3(%arg0: i32, %arg1: i32) -> (i32, i32) {
    %c0_i32 = arith.constant 0 : i32
    %c0_i32_0 = arith.constant 0 : i32
    %c0_i32_1 = arith.constant 0 : i32
    return %c0_i32, %c0_i32_0 : i32, i32
  }
  func.func @transform_4(%arg0: i32, %arg1: i32) -> (i32, i32) {
    %c0_i32 = arith.constant 0 : i32
    %c0_i32_0 = arith.constant 0 : i32
    %c0_i32_1 = arith.constant 0 : i32
    return %c0_i32, %c0_i32_0 : i32, i32
  }
  func.func @transform_5(%arg0: i32, %arg1: i32) -> (i32, i32) {
    %c0_i32 = arith.constant 0 : i32
    %c0_i32_0 = arith.constant 0 : i32
    %c0_i32_1 = arith.constant 0 : i32
    return %c0_i32, %c0_i32_0 : i32, i32
  }
  func.func @transform_6(%arg0: i32, %arg1: i32) -> (i32, i32) {
    %c0_i32 = arith.constant 0 : i32
    %c0_i32_0 = arith.constant 0 : i32
    %c0_i32_1 = arith.constant 0 : i32
    return %c0_i32, %c0_i32_0 : i32, i32
  }
  func.func @transform_7(%arg0: i32, %arg1: i32) -> (i32, i32, i32) {
    %c0_i32 = arith.constant 0 : i32
    %c0_i32_0 = arith.constant 0 : i32
    return %arg0, %c0_i32, %arg1 : i32, i32, i32
  }
}

</mosaic_0001>

<llo_original>
// kernel: mlp2d_forward.3
$region0: #{mlp2d_forward.3}
  #allocation0 [shape = 'u32[]', space=smem, size = 0x4, offset = 0x4, fixed_abs, tag = 'smem constant byte address 0x4 - core index']
  #allocation1 [shape = 'u32[144,128]{1,0:T(1,128)}', space=vmem, size = 0x12000, scoped, tag = 'internal scratch']
  %s0 = inlined_call_operand.vmem [shape: f32[2,4,256], index: 0, kind: input, shape index: {}]
  %s1 = inlined_call_operand.vmem [shape: f32[32,4], index: 1, kind: input, shape index: {}]
  %s2 = inlined_call_operand.vmem [shape: f32[2,32,1], index: 2, kind: output, shape index: {0}]
  %s3 = inlined_call_operand.vmem [shape: f32[2,32,1], index: 3, kind: output, shape index: {1}]
  %4 = xla_tuple %s2, %s3
  %s5 = sld [smem:[#allocation0]]
  $region53: #{mlp2d_forward.3} parent=0
    _
  %s7 = ssub.s32 1, %s5
  %s8 = scalar_select 0, %s7, %s5
  loop: start=0, step=1, limit=4
  $region2: #{mlp2d_forward.3} parent=0 // loop_pre_header
    _
  $region3: #{mlp2d_forward.3} parent=0 // loop_header
    %s10 = sphi 0, %s14
    %p11 = scmp.ge.s32.totalorder %s10, 4
    %s17 = sphi 0, %s29
    %s18 = sphi 0, %s25
    %s19 = sphi 0, %s17
    %s20 = sphi 0, %s18
    %s21 = sphi 0, %s19
    %s22 = sphi 0, %s20
    %s34 = sphi 0, %s36
    %s37 = sphi 0, %s34
    %s38 = sphi 0, %s37
    %s54 = sphi 0, %s38
    %s58 = sphi 0, %s58
    %s60 = sphi 0, %s58
    %s61 = sphi 0, %s60
    %s75 = sphi 0, %s61
    %s81 = sphi 0, %s83
    %s84 = sphi 0, %s81
    %s85 = sphi 0, %s84
    %s101 = sphi 0, %s85
    %s107 = sphi 0, %s109
    %s110 = sphi 0, %s107
    %s111 = sphi 0, %s110
    %s127 = sphi 0, %s111
  $region4: #{mlp2d_forward.3} parent=0 // loop_header_branch
    %13 = sbr.rel (%p11) target = $region8
  $region5: #{mlp2d_forward.3} parent=0 // loop_body
    %s15 = ssub.s32 %s10, 1
    %s16 = ssub.s32 %s10, 2
    %s23 = sadd.s32 1, %s18
    %p24 = scmp.ge.s32.totalorder %s23, 1
    %s25 = scalar_select %p24, 0, %s23
    %s26 = sadd.s32 1, %s17
    %s27 = scalar_select %p24, %s26, %s17
    %p28 = scmp.ge.s32.totalorder %s27, 2
    %s29 = scalar_select %p28, 0, %s27
    %s30 = ssub.s32 %s17, %s29
    %s31 = ssub.s32 %s18, %s25
    %s32 = sor.u32 %s30, %s31
    %p33 = scmp.eq.s32.totalorder %s32, 0
    %s35 = sadd.s32 %s34, 1
    %s36 = scalar_select %p33, %s34, %s35
    %p39 = pneg %p33
    %p40 = scmp.eq.s32.totalorder %s10, 1
    %p41 = por %p39, %p40
    %p42 = scmp.ne.s32.totalorder %s34, %s37
    %p43 = scmp.eq.s32.totalorder %s10, 0
    %p44 = por %p42, %p43
    %p45 = scmp.ne.s32.totalorder %s34, %s37
    %p46 = scmp.eq.s32.totalorder %s15, 1
    %p47 = por %p45, %p46
    %p48 = scmp.ne.s32.totalorder %s37, %s38
    %p49 = scmp.eq.s32.totalorder %s15, 0
    %p50 = por %p48, %p49
    %p51 = scmp.ne.s32.totalorder %s37, %s38
    %p52 = scmp.eq.s32.totalorder %s16, 1
    %p53 = por %p51, %p52
    %p55 = scmp.ne.s32.totalorder %s38, %s54
    %p56 = scmp.eq.s32.totalorder %s16, 0
    %p57 = por %p55, %p56
    %s59 = sadd.s32 %s58, 1
    %p62 = scmp.eq.s32.totalorder %s10, 1
    %p63 = scmp.ne.s32.totalorder %s58, %s60
    %p64 = scmp.eq.s32.totalorder %s10, 0
    %p65 = por %p63, %p64
    %p66 = scmp.ne.s32.totalorder %s58, %s60
    %p67 = scmp.eq.s32.totalorder %s15, 1
    %p68 = por %p66, %p67
    %p69 = scmp.ne.s32.totalorder %s60, %s61
    %p70 = scmp.eq.s32.totalorder %s15, 0
    %p71 = por %p69, %p70
    %p72 = scmp.ne.s32.totalorder %s60, %s61
    %p73 = scmp.eq.s32.totalorder %s16, 1
    %p74 = por %p72, %p73
    %p76 = scmp.ne.s32.totalorder %s61, %s75
    %p77 = scmp.eq.s32.totalorder %s16, 0
    %p78 = por %p76, %p77
    %s79 = ssub.s32 %s17, %s29
    %p80 = scmp.eq.s32.totalorder %s79, 0
    %s82 = sadd.s32 %s81, 1
    %s83 = scalar_select %p80, %s81, %s82
    %p86 = pneg %p80
    %p87 = scmp.eq.s32.totalorder %s10, 1
    %p88 = por %p86, %p87
    %p89 = scmp.ne.s32.totalorder %s81, %s84
    %p90 = scmp.eq.s32.totalorder %s10, 0
    %p91 = por %p89, %p90
    %p92 = scmp.ne.s32.totalorder %s81, %s84
    %p93 = scmp.eq.s32.totalorder %s15, 1
    %p94 = por %p92, %p93
    %p95 = scmp.ne.s32.totalorder %s84, %s85
    %p96 = scmp.eq.s32.totalorder %s15, 0
    %p97 = por %p95, %p96
    %p98 = scmp.ne.s32.totalorder %s84, %s85
    %p99 = scmp.eq.s32.totalorder %s16, 1
    %p100 = por %p98, %p99
    %p102 = scmp.ne.s32.totalorder %s85, %s101
    %p103 = scmp.eq.s32.totalorder %s16, 0
    %p104 = por %p102, %p103
    %s105 = ssub.s32 %s17, %s29
    %p106 = scmp.eq.s32.totalorder %s105, 0
    %s108 = sadd.s32 %s107, 1
    %s109 = scalar_select %p106, %s107, %s108
    %p112 = pneg %p106
    %p113 = scmp.eq.s32.totalorder %s10, 1
    %p114 = por %p112, %p113
    %p115 = scmp.ne.s32.totalorder %s107, %s110
    %p116 = scmp.eq.s32.totalorder %s10, 0
    %p117 = por %p115, %p116
    %p118 = scmp.ne.s32.totalorder %s107, %s110
    %p119 = scmp.eq.s32.totalorder %s15, 1
    %p120 = por %p118, %p119
    %p121 = scmp.ne.s32.totalorder %s110, %s111
    %p122 = scmp.eq.s32.totalorder %s15, 0
    %p123 = por %p121, %p122
    %p124 = scmp.ne.s32.totalorder %s110, %s111
    %p125 = scmp.eq.s32.totalorder %s16, 1
    %p126 = por %p124, %p125
    %p128 = scmp.ne.s32.totalorder %s111, %s127
    %p129 = scmp.eq.s32.totalorder %s16, 0
    %p130 = por %p128, %p129
    %p131 = scmp.le.s32.totalorder 1, %s10
    %p132 = scmp.lt.s32.totalorder %s10, 3
    %p133 = pnand %p131, %p132
    %p134 = pneg %p133
    // Predicated region
    $region9: #{mlp2d_forward.3} parent=5 // pred_check
      _
    $region10: #{mlp2d_forward.3} parent=5 // pred_check_branch
      %136 = sbr.rel (%p133) target = $region12
    $region11: #{mlp2d_forward.3} parent=5 // pred_region
      %s137 = ssub.s32 %s10, 1
      // Predicated region
      $region13: #{mlp2d_forward.3} parent=11 // pred_check
        %p138 = pneg %p71
      $region14: #{mlp2d_forward.3} parent=11 // pred_check_branch
        %140 = sbr.rel (%p138) target = $region16
      $region15: #{mlp2d_forward.3} parent=11 // pred_region
        _
      $region16: #{mlp2d_forward.3} parent=11 // pred_fallthru
        _
    $region12: #{mlp2d_forward.3} parent=5 // pred_fallthru
      _
    %p141 = scmp.lt.s32.totalorder %s10, 2
    // Predicated region
    $region17: #{mlp2d_forward.3} parent=5 // pred_check
      %p142 = pneg %p141
    $region18: #{mlp2d_forward.3} parent=5 // pred_check_branch
      %144 = sbr.rel (%p142) target = $region20
    $region19: #{mlp2d_forward.3} parent=5 // pred_region
      // Predicated region
      $region21: #{mlp2d_forward.3} parent=19 // pred_check
        %p145 = pneg %p44
      $region22: #{mlp2d_forward.3} parent=19 // pred_check_branch
        %147 = sbr.rel (%p145) target = $region24
      $region23: #{mlp2d_forward.3} parent=19 // pred_region
        %s148 = smul.u32 2, %s18
        %p149 = scmp.lt.s32.totalorder %s17, 1
        %s150 = scalar_select %p149, %s17, 1
        %p151 = scmp.lt.s32.totalorder %s148, 1
        %s152 = scalar_select %p151, %s148, 1
        %s153 = smul.addr %s150, 2
        %s154 = sadd.s32 %s152, %s153
        %s155 = smul.addr %s154, 4
        %s156 = scalar_lea.vmem %s0, %s155
        %s157 = smul.u32 2, %s18
      $region24: #{mlp2d_forward.3} parent=19 // pred_fallthru
        _
    $region20: #{mlp2d_forward.3} parent=5 // pred_fallthru
      _
    %p158 = scmp.le.s32.totalorder 1, %s10
    %p159 = scmp.lt.s32.totalorder %s10, 3
    %p160 = pnand %p158, %p159
    %p161 = pneg %p160
    // Predicated region
    $region25: #{mlp2d_forward.3} parent=5 // pred_check
      _
    $region26: #{mlp2d_forward.3} parent=5 // pred_check_branch
      %163 = sbr.rel (%p160) target = $region28
    $region27: #{mlp2d_forward.3} parent=5 // pred_region
      %s164 = ssub.s32 %s10, 1
      %s165 = smul.u32 2, %s20
      %p166 = scmp.lt.s32.totalorder %s19, 1
      %s167 = scalar_select %p166, %s19, 1
      %p168 = scmp.lt.s32.totalorder %s165, 1
      %s169 = scalar_select %p168, %s165, 1
      %s170 = smul.addr %s167, 2
      %s171 = sadd.s32 %s169, %s170
      %s172 = smul.addr %s171, 4
      %s173 = scalar_lea.vmem %s0, %s172
      %p174 = pneg %p50
      %p175 = pneg %p47
      %p176 = pneg %p71
      %p177 = pneg %p68
      %p178 = pneg %p97
      %p179 = pneg %p94
      %p180 = scmp.lt.s32.totalorder %s19, 1
      %s181 = scalar_select %p180, %s19, 1
      %s182 = smul.addr %s181, 4
      %s183 = smul.addr %s182, 8
      %s184 = scalar_lea.vmem %s2, %s183
      %p185 = pneg %p123
      %p186 = pneg %p120
      %p187 = scmp.lt.s32.totalorder %s19, 1
      %s188 = scalar_select %p187, %s19, 1
      %s189 = smul.addr %s188, 4
      %s190 = smul.addr %s189, 8
      %s191 = scalar_lea.vmem %s3, %s190
      %s192 = smul.u32 2, %s20
      %p193 = scmp.lt.s32.totalorder %s19, 1
      %s194 = scalar_select %p193, %s19, 1
      %p195 = scmp.lt.s32.totalorder %s192, 1
      %s196 = scalar_select %p195, %s192, 1
      %s197 = smul.addr %s194, 2
      %s198 = sadd.s32 %s196, %s197
      %s199 = smul.addr %s198, 4
      %s200 = scalar_lea.vmem %s0, %s199
      %s201 = smul.u32 2, %s20
      %p202 = scmp.lt.s32.totalorder %s19, 1
      %s203 = scalar_select %p202, %s19, 1
      %s204 = smul.addr %s203, 4
      %s205 = smul.addr %s204, 8
      %s206 = scalar_lea.vmem %s2, %s205
      %p207 = scmp.lt.s32.totalorder %s19, 1
      %s208 = scalar_select %p207, %s19, 1
      %s209 = smul.addr %s208, 4
      %s210 = smul.addr %s209, 8
      %s211 = scalar_lea.vmem %s3, %s210
      %p212 = scmp.eq.s32.totalorder %s20, 0
      // Predicated region
      $region29: #{mlp2d_forward.3} parent=27 // pred_check
        %p213 = pneg %p212
      $region30: #{mlp2d_forward.3} parent=27 // pred_check_branch
        %215 = sbr.rel (%p213) target = $region32
      $region31: #{mlp2d_forward.3} parent=27 // pred_region
        %vm216 = vcmask 7168
        %217 = vst.msk [vmem:[%s206] sm:$0xff] %vm216, 0.0
        %218 = vst.msk [vmem:[%s206 + $0x8] sm:$0xff] %vm216, 0.0
        %219 = vst.msk [vmem:[%s206 + $0x10] sm:$0xff] %vm216, 0.0
        %220 = vst.msk [vmem:[%s206 + $0x18] sm:$0xff] %vm216, 0.0
        %221 = vst.msk [vmem:[%s211] sm:$0xff] %vm216, 0.0
        %222 = vst.msk [vmem:[%s211 + $0x8] sm:$0xff] %vm216, 0.0
        %223 = vst.msk [vmem:[%s211 + $0x10] sm:$0xff] %vm216, 0.0
        %224 = vst.msk [vmem:[%s211 + $0x18] sm:$0xff] %vm216, 0.0
      $region32: #{mlp2d_forward.3} parent=27 // pred_fallthru
        _
      %v225 = vld [vmem:[%s1] sm:$0xff]
      %v226 = vld [vmem:[%s1 + $0x8] sm:$0xff]
      %v227 = vld [vmem:[%s1 + $0x10] sm:$0xff]
      %v228 = vld [vmem:[%s1 + $0x18] sm:$0xff]
      %v229 = vld [vmem:[%s200] sm:$0xff]
      %v231 = vcombine.high %v229, %v229
      %vm232 = vcmask 31744
      %v234 = vsel %vm232, %v225, 0
      %v237 = vsel %vm232, %v226, 0
      %v240 = vsel %vm232, %v227, 0
      %v243 = vsel %vm232, %v228, 0
      %vm245 = vcmask 1043456
      %v246 = vsel %vm245, %v229, 0
      %v248 = vsel %vm245, %v231, 0
      %250 = vmatprep.subr.mxu0 %v248
      %251 = vmatpush1.msra.mxu0 %v246
      %252 = vmatprep.subr.mxu0 0.0
      %253 = vmatpush1.msra.mxu0 0.0
      %254 = vmatprep.subr.mxu0 0.0
      %255 = vmatpush1.msra.mxu0 0.0
      %256 = vmatprep.subr.mxu0 0.0
      %257 = vmatpush1.msra.mxu0 0.0
      %258 = vmatprep.subr.mxu0 0.0
      %259 = vmatpush1.msra.mxu0 0.0
      %260 = vmatprep.subr.mxu0 0.0
      %261 = vmatpush1.msra.mxu0 0.0
      %262 = vmatprep.subr.mxu0 0.0
      %263 = vmatpush1.msra.mxu0 0.0
      %264 = vmatprep.subr.mxu0 0.0
      %265 = vmatpush1.msra.mxu0 0.0
      %266 = vmatprep.subr.mxu0 0.0
      %267 = vmatpush1.msra.mxu0 0.0
      %268 = vmatprep.subr.mxu0 0.0
      %269 = vmatpush1.msra.mxu0 0.0
      %270 = vmatprep.subr.mxu0 0.0
      %271 = vmatpush1.msra.mxu0 0.0
      %272 = vmatprep.subr.mxu0 0.0
      %273 = vmatpush1.msra.mxu0 0.0
      %274 = vmatprep.subr.mxu0 0.0
      %275 = vmatpush1.msra.mxu0 0.0
      %276 = vmatprep.subr.mxu0 0.0
      %277 = vmatpush1.msra.mxu0 0.0
      %278 = vmatprep.subr.mxu0 0.0
      %279 = vmatpush1.msra.mxu0 0.0
      %280 = vmatprep.subr.mxu0 0.0
      %281 = vmatpush1.msra.mxu0 0.0
      %282 = vmatprep.subr.mxu0 0.0
      %283 = vmatpush1.msra.mxu0 0.0
      %284 = vmatprep.subr.mxu0 0.0
      %285 = vmatpush1.msra.mxu0 0.0
      %286 = vmatprep.subr.mxu0 0.0
      %287 = vmatpush1.msra.mxu0 0.0
      %288 = vmatprep.subr.mxu0 0.0
      %289 = vmatpush1.msra.mxu0 0.0
      %290 = vmatprep.subr.mxu0 0.0
      %291 = vmatpush1.msra.mxu0 0.0
      %292 = vmatprep.subr.mxu0 0.0
      %293 = vmatpush1.msra.mxu0 0.0
      %294 = vmatprep.subr.mxu0 0.0
      %295 = vmatpush1.msra.mxu0 0.0
      %296 = vmatprep.subr.mxu0 0.0
      %297 = vmatpush1.msra.mxu0 0.0
      %298 = vmatprep.subr.mxu0 0.0
      %299 = vmatpush1.msra.mxu0 0.0
      %300 = vmatprep.subr.mxu0 0.0
      %301 = vmatpush1.msra.mxu0 0.0
      %302 = vmatprep.subr.mxu0 0.0
      %303 = vmatpush1.msra.mxu0 0.0
      %304 = vmatprep.subr.mxu0 0.0
      %305 = vmatpush1.msra.mxu0 0.0
      %306 = vmatprep.subr.mxu0 0.0
      %307 = vmatpush1.msra.mxu0 0.0
      %308 = vmatprep.subr.mxu0 0.0
      %309 = vmatpush1.msra.mxu0 0.0
      %310 = vmatprep.subr.mxu0 0.0
      %311 = vmatpush1.msra.mxu0 0.0
      %312 = vmatprep.subr.mxu0 0.0
      %313 = vmatpush1.msra.mxu0 0.0
      %314 = vmatprep.mubr.f32.mxu0 0.0
      %315 = vmatmul.mubr.f32.gmra.mrb[0].mxu0 %v234
      %v316 = vpop.f32.mrb[0].mxu0
      %v317 = vadd.f32 0.0, %v316
      %v318 = vpop.f32.mrb[0].mxu0
      %v319 = vadd.f32 0.0, %v318
      %320 = vmatprep.mubr.f32.mxu0 0.0
      %321 = vmatmul.mubr.f32.gmra.mrb[0].mxu0 %v237
      %v322 = vpop.f32.mrb[0].mxu0
      %v323 = vadd.f32 0.0, %v322
      %v324 = vpop.f32.mrb[0].mxu0
      %v325 = vadd.f32 0.0, %v324
      %326 = vmatprep.mubr.f32.mxu0 0.0
      %327 = vmatmul.mubr.f32.gmra.mrb[0].mxu0 %v240
      %v328 = vpop.f32.mrb[0].mxu0
      %v329 = vadd.f32 0.0, %v328
      %v330 = vpop.f32.mrb[0].mxu0
      %v331 = vadd.f32 0.0, %v330
      %332 = vmatprep.mubr.f32.mxu0 0.0
      %333 = vmatmul.mubr.f32.gmra.mrb[0].mxu0 %v243
      %v334 = vpop.f32.mrb[0].mxu0
      %v335 = vadd.f32 0.0, %v334
      %v336 = vpop.f32.mrb[0].mxu0
      %v337 = vadd.f32 0.0, %v336
      %338 = vdwg.mxu0
      %v339 = vld [vmem:[%s206] sm:$0xff]
      %v340 = vld [vmem:[%s206 + $0x8] sm:$0xff]
      %v341 = vld [vmem:[%s206 + $0x10] sm:$0xff]
      %v342 = vld [vmem:[%s206 + $0x18] sm:$0xff]
      %v343 = vadd.f32 %v317, %v319
      %344 = vadd.xlane.f32.xlu0 %v343
      %v345 = vpop.xlane.xlu0 %344
      %v346 = vadd.f32 %v323, %v325
      %347 = vadd.xlane.f32.xlu0 %v346
      %v348 = vpop.xlane.xlu0 %347
      %v349 = vadd.f32 %v329, %v331
      %350 = vadd.xlane.f32.xlu0 %v349
      %v351 = vpop.xlane.xlu0 %350
      %v352 = vadd.f32 %v335, %v337
      %353 = vadd.xlane.f32.xlu0 %v352
      %v354 = vpop.xlane.xlu0 %353
      %v355 = vadd.f32 %v339, %v345
      %v356 = vadd.f32 %v340, %v348
      %v357 = vadd.f32 %v341, %v351
      %v358 = vadd.f32 %v342, %v354
      %vm359 = vcmask 7168
      %360 = vst.msk [vmem:[%s206] sm:$0xff] %vm359, %v355
      %361 = vst.msk [vmem:[%s206 + $0x8] sm:$0xff] %vm359, %v356
      %362 = vst.msk [vmem:[%s206 + $0x10] sm:$0xff] %vm359, %v357
      %363 = vst.msk [vmem:[%s206 + $0x18] sm:$0xff] %vm359, %v358
      %v364 = vld [vmem:[%s211] sm:$0xff]
      %v365 = vld [vmem:[%s211 + $0x8] sm:$0xff]
      %v366 = vld [vmem:[%s211 + $0x10] sm:$0xff]
      %v367 = vld [vmem:[%s211 + $0x18] sm:$0xff]
      %v368 = vmul.f32 %v317, %v317
      %v369 = vmul.f32 %v319, %v319
      %v370 = vmul.f32 %v323, %v323
      %v371 = vmul.f32 %v325, %v325
      %v372 = vmul.f32 %v329, %v329
      %v373 = vmul.f32 %v331, %v331
      %v374 = vmul.f32 %v335, %v335
      %v375 = vmul.f32 %v337, %v337
      %v376 = vadd.f32 %v368, %v369
      %377 = vadd.xlane.f32.xlu0 %v376
      %v378 = vpop.xlane.xlu0 %377
      %v379 = vadd.f32 %v370, %v371
      %380 = vadd.xlane.f32.xlu0 %v379
      %v381 = vpop.xlane.xlu0 %380
      %v382 = vadd.f32 %v372, %v373
      %383 = vadd.xlane.f32.xlu0 %v382
      %v384 = vpop.xlane.xlu0 %383
      %v385 = vadd.f32 %v374, %v375
      %386 = vadd.xlane.f32.xlu0 %v385
      %v387 = vpop.xlane.xlu0 %386
      %v388 = vadd.f32 %v364, %v378
      %v389 = vadd.f32 %v365, %v381
      %v390 = vadd.f32 %v366, %v384
      %v391 = vadd.f32 %v367, %v387
      %392 = vst.msk [vmem:[%s211] sm:$0xff] %vm359, %v388
      %393 = vst.msk [vmem:[%s211 + $0x8] sm:$0xff] %vm359, %v389
      %394 = vst.msk [vmem:[%s211 + $0x10] sm:$0xff] %vm359, %v390
      %395 = vst.msk [vmem:[%s211 + $0x18] sm:$0xff] %vm359, %v391
      %p396 = scmp.lt.s32.totalorder %s19, 1
      %s397 = scalar_select %p396, %s19, 1
      %s398 = smul.addr %s397, 4
      %s399 = smul.addr %s398, 8
      %s400 = scalar_lea.vmem %s2, %s399
      %p401 = scmp.lt.s32.totalorder %s19, 1
      %s402 = scalar_select %p401, %s19, 1
      %s403 = smul.addr %s402, 4
      %s404 = smul.addr %s403, 8
      %s405 = scalar_lea.vmem %s3, %s404
      // Predicated region
      $region33: #{mlp2d_forward.3} parent=27 // pred_check
        %p406 = pneg %p94
      $region34: #{mlp2d_forward.3} parent=27 // pred_check_branch
        %408 = sbr.rel (%p406) target = $region36
      $region35: #{mlp2d_forward.3} parent=27 // pred_region
        _
      $region36: #{mlp2d_forward.3} parent=27 // pred_fallthru
        _
      // Predicated region
      $region37: #{mlp2d_forward.3} parent=27 // pred_check
        %p409 = pneg %p120
      $region38: #{mlp2d_forward.3} parent=27 // pred_check_branch
        %411 = sbr.rel (%p409) target = $region40
      $region39: #{mlp2d_forward.3} parent=27 // pred_region
        _
      $region40: #{mlp2d_forward.3} parent=27 // pred_fallthru
        _
    $region28: #{mlp2d_forward.3} parent=5 // pred_fallthru
      _
    %p412 = scmp.le.s32.totalorder 2, %s10
    // Predicated region
    $region41: #{mlp2d_forward.3} parent=5 // pred_check
      %p413 = pneg %p412
    $region42: #{mlp2d_forward.3} parent=5 // pred_check_branch
      %415 = sbr.rel (%p413) target = $region44
    $region43: #{mlp2d_forward.3} parent=5 // pred_region
      %s416 = ssub.s32 %s10, 2
      // Predicated region
      $region45: #{mlp2d_forward.3} parent=43 // pred_check
        %p417 = pneg %p100
      $region46: #{mlp2d_forward.3} parent=43 // pred_check_branch
        %419 = sbr.rel (%p417) target = $region48
      $region47: #{mlp2d_forward.3} parent=43 // pred_region
        %p420 = scmp.lt.s32.totalorder %s21, 1
        %s421 = scalar_select %p420, %s21, 1
        %s422 = smul.addr %s421, 4
        %s423 = smul.addr %s422, 8
        %s424 = scalar_lea.vmem %s2, %s423
      $region48: #{mlp2d_forward.3} parent=43 // pred_fallthru
        _
      // Predicated region
      $region49: #{mlp2d_forward.3} parent=43 // pred_check
        %p425 = pneg %p126
      $region50: #{mlp2d_forward.3} parent=43 // pred_check_branch
        %427 = sbr.rel (%p425) target = $region52
      $region51: #{mlp2d_forward.3} parent=43 // pred_region
        %p428 = scmp.lt.s32.totalorder %s21, 1
        %s429 = scalar_select %p428, %s21, 1
        %s430 = smul.addr %s429, 4
        %s431 = smul.addr %s430, 8
        %s432 = scalar_lea.vmem %s3, %s431
      $region52: #{mlp2d_forward.3} parent=43 // pred_fallthru
        _
    $region44: #{mlp2d_forward.3} parent=5 // pred_fallthru
      _
  $region6: #{mlp2d_forward.3} parent=0 // loop_footer
    %s14 = sadd.s32 1, %s10
  $region7: #{mlp2d_forward.3} parent=0 // loop_footer_branch
    %9 = sbr.rel target = $region3
  $region8: #{mlp2d_forward.3} parent=0 // loop_exit
    _

// kernel: mlp2d_forward.5
$region0: #{mlp2d_forward.5}
  #allocation0 [shape = 'u32[]', space=smem, size = 0x4, offset = 0x4, fixed_abs, tag = 'smem constant byte address 0x4 - core index']
  #allocation1 [shape = 'u32[144,128]{1,0:T(1,128)}', space=vmem, size = 0x12000, scoped, tag = 'internal scratch']
  %s0 = inlined_call_operand.vmem [shape: f32[2,4,256], index: 0, kind: input, shape index: {}]
  %s1 = inlined_call_operand.vmem [shape: f32[32,4], index: 1, kind: input, shape index: {}]
  %s2 = inlined_call_operand.vmem [shape: f32[32,1], index: 2, kind: input, shape index: {}]
  %s3 = inlined_call_operand.vmem [shape: f32[32,1], index: 3, kind: input, shape index: {}]
  %s4 = inlined_call_operand.vmem [shape: f32[16,32], index: 4, kind: input, shape index: {}]
  %s5 = inlined_call_operand.vmem [shape: f32[16,1], index: 5, kind: input, shape index: {}]
  %s6 = inlined_call_operand.vmem [shape: f32[16,1], index: 6, kind: input, shape index: {}]
  %s7 = inlined_call_operand.vmem [shape: f32[2,16,256], index: 7, kind: output, shape index: {}]
  %s8 = sld [smem:[#allocation0]]
  $region61: #{mlp2d_forward.5} parent=0
    _
  %s10 = ssub.s32 1, %s8
  %s11 = scalar_select 0, %s10, %s8
  loop: start=0, step=1, limit=4
  $region2: #{mlp2d_forward.5} parent=0 // loop_pre_header
    _
  $region3: #{mlp2d_forward.5} parent=0 // loop_header
    %s13 = sphi 0, %s17
    %p14 = scmp.ge.s32.totalorder %s13, 4
    %s20 = sphi 0, %s32
    %s21 = sphi 0, %s28
    %s22 = sphi 0, %s20
    %s23 = sphi 0, %s21
    %s24 = sphi 0, %s22
    %s25 = sphi 0, %s23
    %s37 = sphi 0, %s39
    %s40 = sphi 0, %s37
    %s41 = sphi 0, %s40
    %s57 = sphi 0, %s41
    %s61 = sphi 0, %s61
    %s63 = sphi 0, %s61
    %s64 = sphi 0, %s63
    %s78 = sphi 0, %s64
    %s82 = sphi 0, %s82
    %s84 = sphi 0, %s82
    %s85 = sphi 0, %s84
    %s99 = sphi 0, %s85
    %s103 = sphi 0, %s103
    %s105 = sphi 0, %s103
    %s106 = sphi 0, %s105
    %s120 = sphi 0, %s106
    %s124 = sphi 0, %s124
    %s126 = sphi 0, %s124
    %s127 = sphi 0, %s126
    %s141 = sphi 0, %s127
    %s145 = sphi 0, %s145
    %s147 = sphi 0, %s145
    %s148 = sphi 0, %s147
    %s162 = sphi 0, %s148
    %s166 = sphi 0, %s166
    %s168 = sphi 0, %s166
    %s169 = sphi 0, %s168
    %s183 = sphi 0, %s169
    %s191 = sphi 0, %s193
    %s194 = sphi 0, %s191
    %s195 = sphi 0, %s194
    %s211 = sphi 0, %s195
  $region4: #{mlp2d_forward.5} parent=0 // loop_header_branch
    %16 = sbr.rel (%p14) target = $region8
  $region5: #{mlp2d_forward.5} parent=0 // loop_body
    %s18 = ssub.s32 %s13, 1
    %s19 = ssub.s32 %s13, 2
    %s26 = sadd.s32 1, %s21
    %p27 = scmp.ge.s32.totalorder %s26, 1
    %s28 = scalar_select %p27, 0, %s26
    %s29 = sadd.s32 1, %s20
    %s30 = scalar_select %p27, %s29, %s20
    %p31 = scmp.ge.s32.totalorder %s30, 2
    %s32 = scalar_select %p31, 0, %s30
    %s33 = ssub.s32 %s20, %s32
    %s34 = ssub.s32 %s21, %s28
    %s35 = sor.u32 %s33, %s34
    %p36 = scmp.eq.s32.totalorder %s35, 0
    %s38 = sadd.s32 %s37, 1
    %s39 = scalar_select %p36, %s37, %s38
    %p42 = pneg %p36
    %p43 = scmp.eq.s32.totalorder %s13, 1
    %p44 = por %p42, %p43
    %p45 = scmp.ne.s32.totalorder %s37, %s40
    %p46 = scmp.eq.s32.totalorder %s13, 0
    %p47 = por %p45, %p46
    %p48 = scmp.ne.s32.totalorder %s37, %s40
    %p49 = scmp.eq.s32.totalorder %s18, 1
    %p50 = por %p48, %p49
    %p51 = scmp.ne.s32.totalorder %s40, %s41
    %p52 = scmp.eq.s32.totalorder %s18, 0
    %p53 = por %p51, %p52
    %p54 = scmp.ne.s32.totalorder %s40, %s41
    %p55 = scmp.eq.s32.totalorder %s19, 1
    %p56 = por %p54, %p55
    %p58 = scmp.ne.s32.totalorder %s41, %s57
    %p59 = scmp.eq.s32.totalorder %s19, 0
    %p60 = por %p58, %p59
    %s62 = sadd.s32 %s61, 1
    %p65 = scmp.eq.s32.totalorder %s13, 1
    %p66 = scmp.ne.s32.totalorder %s61, %s63
    %p67 = scmp.eq.s32.totalorder %s13, 0
    %p68 = por %p66, %p67
    %p69 = scmp.ne.s32.totalorder %s61, %s63
    %p70 = scmp.eq.s32.totalorder %s18, 1
    %p71 = por %p69, %p70
    %p72 = scmp.ne.s32.totalorder %s63, %s64
    %p73 = scmp.eq.s32.totalorder %s18, 0
    %p74 = por %p72, %p73
    %p75 = scmp.ne.s32.totalorder %s63, %s64
    %p76 = scmp.eq.s32.totalorder %s19, 1
    %p77 = por %p75, %p76
    %p79 = scmp.ne.s32.totalorder %s64, %s78
    %p80 = scmp.eq.s32.totalorder %s19, 0
    %p81 = por %p79, %p80
    %s83 = sadd.s32 %s82, 1
    %p86 = scmp.eq.s32.totalorder %s13, 1
    %p87 = scmp.ne.s32.totalorder %s82, %s84
    %p88 = scmp.eq.s32.totalorder %s13, 0
    %p89 = por %p87, %p88
    %p90 = scmp.ne.s32.totalorder %s82, %s84
    %p91 = scmp.eq.s32.totalorder %s18, 1
    %p92 = por %p90, %p91
    %p93 = scmp.ne.s32.totalorder %s84, %s85
    %p94 = scmp.eq.s32.totalorder %s18, 0
    %p95 = por %p93, %p94
    %p96 = scmp.ne.s32.totalorder %s84, %s85
    %p97 = scmp.eq.s32.totalorder %s19, 1
    %p98 = por %p96, %p97
    %p100 = scmp.ne.s32.totalorder %s85, %s99
    %p101 = scmp.eq.s32.totalorder %s19, 0
    %p102 = por %p100, %p101
    %s104 = sadd.s32 %s103, 1
    %p107 = scmp.eq.s32.totalorder %s13, 1
    %p108 = scmp.ne.s32.totalorder %s103, %s105
    %p109 = scmp.eq.s32.totalorder %s13, 0
    %p110 = por %p108, %p109
    %p111 = scmp.ne.s32.totalorder %s103, %s105
    %p112 = scmp.eq.s32.totalorder %s18, 1
    %p113 = por %p111, %p112
    %p114 = scmp.ne.s32.totalorder %s105, %s106
    %p115 = scmp.eq.s32.totalorder %s18, 0
    %p116 = por %p114, %p115
    %p117 = scmp.ne.s32.totalorder %s105, %s106
    %p118 = scmp.eq.s32.totalorder %s19, 1
    %p119 = por %p117, %p118
    %p121 = scmp.ne.s32.totalorder %s106, %s120
    %p122 = scmp.eq.s32.totalorder %s19, 0
    %p123 = por %p121, %p122
    %s125 = sadd.s32 %s124, 1
    %p128 = scmp.eq.s32.totalorder %s13, 1
    %p129 = scmp.ne.s32.totalorder %s124, %s126
    %p130 = scmp.eq.s32.totalorder %s13, 0
    %p131 = por %p129, %p130
    %p132 = scmp.ne.s32.totalorder %s124, %s126
    %p133 = scmp.eq.s32.totalorder %s18, 1
    %p134 = por %p132, %p133
    %p135 = scmp.ne.s32.totalorder %s126, %s127
    %p136 = scmp.eq.s32.totalorder %s18, 0
    %p137 = por %p135, %p136
    %p138 = scmp.ne.s32.totalorder %s126, %s127
    %p139 = scmp.eq.s32.totalorder %s19, 1
    %p140 = por %p138, %p139
    %p142 = scmp.ne.s32.totalorder %s127, %s141
    %p143 = scmp.eq.s32.totalorder %s19, 0
    %p144 = por %p142, %p143
    %s146 = sadd.s32 %s145, 1
    %p149 = scmp.eq.s32.totalorder %s13, 1
    %p150 = scmp.ne.s32.totalorder %s145, %s147
    %p151 = scmp.eq.s32.totalorder %s13, 0
    %p152 = por %p150, %p151
    %p153 = scmp.ne.s32.totalorder %s145, %s147
    %p154 = scmp.eq.s32.totalorder %s18, 1
    %p155 = por %p153, %p154
    %p156 = scmp.ne.s32.totalorder %s147, %s148
    %p157 = scmp.eq.s32.totalorder %s18, 0
    %p158 = por %p156, %p157
    %p159 = scmp.ne.s32.totalorder %s147, %s148
    %p160 = scmp.eq.s32.totalorder %s19, 1
    %p161 = por %p159, %p160
    %p163 = scmp.ne.s32.totalorder %s148, %s162
    %p164 = scmp.eq.s32.totalorder %s19, 0
    %p165 = por %p163, %p164
    %s167 = sadd.s32 %s166, 1
    %p170 = scmp.eq.s32.totalorder %s13, 1
    %p171 = scmp.ne.s32.totalorder %s166, %s168
    %p172 = scmp.eq.s32.totalorder %s13, 0
    %p173 = por %p171, %p172
    %p174 = scmp.ne.s32.totalorder %s166, %s168
    %p175 = scmp.eq.s32.totalorder %s18, 1
    %p176 = por %p174, %p175
    %p177 = scmp.ne.s32.totalorder %s168, %s169
    %p178 = scmp.eq.s32.totalorder %s18, 0
    %p179 = por %p177, %p178
    %p180 = scmp.ne.s32.totalorder %s168, %s169
    %p181 = scmp.eq.s32.totalorder %s19, 1
    %p182 = por %p180, %p181
    %p184 = scmp.ne.s32.totalorder %s169, %s183
    %p185 = scmp.eq.s32.totalorder %s19, 0
    %p186 = por %p184, %p185
    %s187 = ssub.s32 %s20, %s32
    %s188 = ssub.s32 %s21, %s28
    %s189 = sor.u32 %s187, %s188
    %p190 = scmp.eq.s32.totalorder %s189, 0
    %s192 = sadd.s32 %s191, 1
    %s193 = scalar_select %p190, %s191, %s192
    %p196 = pneg %p190
    %p197 = scmp.eq.s32.totalorder %s13, 1
    %p198 = por %p196, %p197
    %p199 = scmp.ne.s32.totalorder %s191, %s194
    %p200 = scmp.eq.s32.totalorder %s13, 0
    %p201 = por %p199, %p200
    %p202 = scmp.ne.s32.totalorder %s191, %s194
    %p203 = scmp.eq.s32.totalorder %s18, 1
    %p204 = por %p202, %p203
    %p205 = scmp.ne.s32.totalorder %s194, %s195
    %p206 = scmp.eq.s32.totalorder %s18, 0
    %p207 = por %p205, %p206
    %p208 = scmp.ne.s32.totalorder %s194, %s195
    %p209 = scmp.eq.s32.totalorder %s19, 1
    %p210 = por %p208, %p209
    %p212 = scmp.ne.s32.totalorder %s195, %s211
    %p213 = scmp.eq.s32.totalorder %s19, 0
    %p214 = por %p212, %p213
    %p215 = scmp.le.s32.totalorder 1, %s13
    %p216 = scmp.lt.s32.totalorder %s13, 3
    %p217 = pnand %p215, %p216
    %p218 = pneg %p217
    // Predicated region
    $region9: #{mlp2d_forward.5} parent=5 // pred_check
      _
    $region10: #{mlp2d_forward.5} parent=5 // pred_check_branch
      %220 = sbr.rel (%p217) target = $region12
    $region11: #{mlp2d_forward.5} parent=5 // pred_region
      %s221 = ssub.s32 %s13, 1
      // Predicated region
      $region13: #{mlp2d_forward.5} parent=11 // pred_check
        %p222 = pneg %p74
      $region14: #{mlp2d_forward.5} parent=11 // pred_check_branch
        %224 = sbr.rel (%p222) target = $region16
      $region15: #{mlp2d_forward.5} parent=11 // pred_region
        _
      $region16: #{mlp2d_forward.5} parent=11 // pred_fallthru
        _
      // Predicated region
      $region17: #{mlp2d_forward.5} parent=11 // pred_check
        %p225 = pneg %p95
      $region18: #{mlp2d_forward.5} parent=11 // pred_check_branch
        %227 = sbr.rel (%p225) target = $region20
      $region19: #{mlp2d_forward.5} parent=11 // pred_region
        _
      $region20: #{mlp2d_forward.5} parent=11 // pred_fallthru
        _
      // Predicated region
      $region21: #{mlp2d_forward.5} parent=11 // pred_check
        %p228 = pneg %p116
      $region22: #{mlp2d_forward.5} parent=11 // pred_check_branch
        %230 = sbr.rel (%p228) target = $region24
      $region23: #{mlp2d_forward.5} parent=11 // pred_region
        _
      $region24: #{mlp2d_forward.5} parent=11 // pred_fallthru
        _
      // Predicated region
      $region25: #{mlp2d_forward.5} parent=11 // pred_check
        %p231 = pneg %p137
      $region26: #{mlp2d_forward.5} parent=11 // pred_check_branch
        %233 = sbr.rel (%p231) target = $region28
      $region27: #{mlp2d_forward.5} parent=11 // pred_region
        _
      $region28: #{mlp2d_forward.5} parent=11 // pred_fallthru
        _
      // Predicated region
      $region29: #{mlp2d_forward.5} parent=11 // pred_check
        %p234 = pneg %p158
      $region30: #{mlp2d_forward.5} parent=11 // pred_check_branch
        %236 = sbr.rel (%p234) target = $region32
      $region31: #{mlp2d_forward.5} parent=11 // pred_region
        _
      $region32: #{mlp2d_forward.5} parent=11 // pred_fallthru
        _
      // Predicated region
      $region33: #{mlp2d_forward.5} parent=11 // pred_check
        %p237 = pneg %p179
      $region34: #{mlp2d_forward.5} parent=11 // pred_check_branch
        %239 = sbr.rel (%p237) target = $region36
      $region35: #{mlp2d_forward.5} parent=11 // pred_region
        _
      $region36: #{mlp2d_forward.5} parent=11 // pred_fallthru
        _
    $region12: #{mlp2d_forward.5} parent=5 // pred_fallthru
      _
    %p240 = scmp.lt.s32.totalorder %s13, 2
    // Predicated region
    $region37: #{mlp2d_forward.5} parent=5 // pred_check
      %p241 = pneg %p240
    $region38: #{mlp2d_forward.5} parent=5 // pred_check_branch
      %243 = sbr.rel (%p241) target = $region40
    $region39: #{mlp2d_forward.5} parent=5 // pred_region
      // Predicated region
      $region41: #{mlp2d_forward.5} parent=39 // pred_check
        %p244 = pneg %p47
      $region42: #{mlp2d_forward.5} parent=39 // pred_check_branch
        %246 = sbr.rel (%p244) target = $region44
      $region43: #{mlp2d_forward.5} parent=39 // pred_region
        %s247 = smul.u32 2, %s21
        %p248 = scmp.lt.s32.totalorder %s20, 1
        %s249 = scalar_select %p248, %s20, 1
        %p250 = scmp.lt.s32.totalorder %s247, 1
        %s251 = scalar_select %p250, %s247, 1
        %s252 = smul.addr %s249, 2
        %s253 = sadd.s32 %s251, %s252
        %s254 = smul.addr %s253, 4
        %s255 = scalar_lea.vmem %s0, %s254
        %s256 = smul.u32 2, %s21
      $region44: #{mlp2d_forward.5} parent=39 // pred_fallthru
        _
    $region40: #{mlp2d_forward.5} parent=5 // pred_fallthru
      _
    %p257 = scmp.le.s32.totalorder 1, %s13
    %p258 = scmp.lt.s32.totalorder %s13, 3
    %p259 = pnand %p257, %p258
    %p260 = pneg %p259
    // Predicated region
    $region45: #{mlp2d_forward.5} parent=5 // pred_check
      _
    $region46: #{mlp2d_forward.5} parent=5 // pred_check_branch
      %262 = sbr.rel (%p259) target = $region48
    $region47: #{mlp2d_forward.5} parent=5 // pred_region
      %s263 = ssub.s32 %s13, 1
      %s264 = smul.u32 2, %s23
      %p265 = scmp.lt.s32.totalorder %s22, 1
      %s266 = scalar_select %p265, %s22, 1
      %p267 = scmp.lt.s32.totalorder %s264, 1
      %s268 = scalar_select %p267, %s264, 1
      %s269 = smul.addr %s266, 2
      %s270 = sadd.s32 %s268, %s269
      %s271 = smul.addr %s270, 4
      %s272 = scalar_lea.vmem %s0, %s271
      %p273 = pneg %p53
      %p274 = pneg %p50
      %p275 = pneg %p74
      %p276 = pneg %p71
      %p277 = pneg %p95
      %p278 = pneg %p92
      %p279 = pneg %p116
      %p280 = pneg %p113
      %p281 = pneg %p137
      %p282 = pneg %p134
      %p283 = pneg %p158
      %p284 = pneg %p155
      %p285 = pneg %p179
      %p286 = pneg %p176
      %p287 = pneg %p207
      %p288 = pneg %p204
      %s289 = smul.u32 2, %s23
      %p290 = scmp.lt.s32.totalorder %s22, 1
      %s291 = scalar_select %p290, %s22, 1
      %p292 = scmp.lt.s32.totalorder %s289, 1
      %s293 = scalar_select %p292, %s289, 1
      %s294 = smul.addr %s291, 4
      %s295 = sadd.s32 %s293, %s294
      %s296 = smul.addr %s295, 8
      %s297 = scalar_lea.vmem %s7, %s296
      %s298 = smul.u32 2, %s23
      %p299 = scmp.lt.s32.totalorder %s22, 1
      %s300 = scalar_select %p299, %s22, 1
      %p301 = scmp.lt.s32.totalorder %s298, 1
      %s302 = scalar_select %p301, %s298, 1
      %s303 = smul.addr %s300, 2
      %s304 = sadd.s32 %s302, %s303
      %s305 = smul.addr %s304, 4
      %s306 = scalar_lea.vmem %s0, %s305
      %s307 = smul.u32 2, %s23
      %s308 = smul.u32 2, %s23
      %p309 = scmp.lt.s32.totalorder %s22, 1
      %s310 = scalar_select %p309, %s22, 1
      %p311 = scmp.lt.s32.totalorder %s308, 1
      %s312 = scalar_select %p311, %s308, 1
      %s313 = smul.addr %s310, 4
      %s314 = sadd.s32 %s312, %s313
      %s315 = smul.addr %s314, 8
      %s316 = scalar_lea.vmem %s7, %s315
      %s317 = smul.u32 2, %s23
      %v318 = vld [vmem:[%s1] sm:$0xff]
      %v319 = vld [vmem:[%s1 + $0x8] sm:$0xff]
      %v320 = vld [vmem:[%s1 + $0x10] sm:$0xff]
      %v321 = vld [vmem:[%s1 + $0x18] sm:$0xff]
      %v322 = vld [vmem:[%s4] sm:$0xff]
      %v323 = vld [vmem:[%s4 + $0x8] sm:$0xff]
      %v324 = vld [vmem:[%s2] sm:$0xff]
      %v325 = vld [vmem:[%s2 + $0x8] sm:$0xff]
      %v326 = vld [vmem:[%s2 + $0x10] sm:$0xff]
      %v327 = vld [vmem:[%s2 + $0x18] sm:$0xff]
      %v328 = vld [vmem:[%s3] sm:$0xff]
      %v329 = vld [vmem:[%s3 + $0x8] sm:$0xff]
      %v330 = vld [vmem:[%s3 + $0x10] sm:$0xff]
      %v331 = vld [vmem:[%s3 + $0x18] sm:$0xff]
      %v332 = vld [vmem:[%s5] sm:$0xff]
      %v333 = vld [vmem:[%s5 + $0x8] sm:$0xff]
      %v334 = vld [vmem:[%s6] sm:$0xff]
      %v335 = vld [vmem:[%s6 + $0x8] sm:$0xff]
      %v336 = vld [vmem:[%s306] sm:$0xff]
      %v338 = vcombine.high %v336, %v336
      %vm339 = vcmask 31744
      %v341 = vsel %vm339, %v318, 0
      %v344 = vsel %vm339, %v319, 0
      %v347 = vsel %vm339, %v320, 0
      %v350 = vsel %vm339, %v321, 0
      %vm352 = vcmask 1043456
      %v353 = vsel %vm352, %v336, 0
      %v355 = vsel %vm352, %v338, 0
      %357 = vmatprep.subr.mxu0 %v355
      %358 = vmatpush1.msra.mxu0 %v353
      %359 = vmatprep.subr.mxu0 0.0
      %360 = vmatpush1.msra.mxu0 0.0
      %361 = vmatprep.subr.mxu0 0.0
      %362 = vmatpush1.msra.mxu0 0.0
      %363 = vmatprep.subr.mxu0 0.0
      %364 = vmatpush1.msra.mxu0 0.0
      %365 = vmatprep.subr.mxu0 0.0
      %366 = vmatpush1.msra.mxu0 0.0
      %367 = vmatprep.subr.mxu0 0.0
      %368 = vmatpush1.msra.mxu0 0.0
      %369 = vmatprep.subr.mxu0 0.0
      %370 = vmatpush1.msra.mxu0 0.0
      %371 = vmatprep.subr.mxu0 0.0
      %372 = vmatpush1.msra.mxu0 0.0
      %373 = vmatprep.subr.mxu0 0.0
      %374 = vmatpush1.msra.mxu0 0.0
      %375 = vmatprep.subr.mxu0 0.0
      %376 = vmatpush1.msra.mxu0 0.0
      %377 = vmatprep.subr.mxu0 0.0
      %378 = vmatpush1.msra.mxu0 0.0
      %379 = vmatprep.subr.mxu0 0.0
      %380 = vmatpush1.msra.mxu0 0.0
      %381 = vmatprep.subr.mxu0 0.0
      %382 = vmatpush1.msra.mxu0 0.0
      %383 = vmatprep.subr.mxu0 0.0
      %384 = vmatpush1.msra.mxu0 0.0
      %385 = vmatprep.subr.mxu0 0.0
      %386 = vmatpush1.msra.mxu0 0.0
      %387 = vmatprep.subr.mxu0 0.0
      %388 = vmatpush1.msra.mxu0 0.0
      %389 = vmatprep.subr.mxu0 0.0
      %390 = vmatpush1.msra.mxu0 0.0
      %391 = vmatprep.subr.mxu0 0.0
      %392 = vmatpush1.msra.mxu0 0.0
      %393 = vmatprep.subr.mxu0 0.0
      %394 = vmatpush1.msra.mxu0 0.0
      %395 = vmatprep.subr.mxu0 0.0
      %396 = vmatpush1.msra.mxu0 0.0
      %397 = vmatprep.subr.mxu0 0.0
      %398 = vmatpush1.msra.mxu0 0.0
      %399 = vmatprep.subr.mxu0 0.0
      %400 = vmatpush1.msra.mxu0 0.0
      %401 = vmatprep.subr.mxu0 0.0
      %402 = vmatpush1.msra.mxu0 0.0
      %403 = vmatprep.subr.mxu0 0.0
      %404 = vmatpush1.msra.mxu0 0.0
      %405 = vmatprep.subr.mxu0 0.0
      %406 = vmatpush1.msra.mxu0 0.0
      %407 = vmatprep.subr.mxu0 0.0
      %408 = vmatpush1.msra.mxu0 0.0
      %409 = vmatprep.subr.mxu0 0.0
      %410 = vmatpush1.msra.mxu0 0.0
      %411 = vmatprep.subr.mxu0 0.0
      %412 = vmatpush1.msra.mxu0 0.0
      %413 = vmatprep.subr.mxu0 0.0
      %414 = vmatpush1.msra.mxu0 0.0
      %415 = vmatprep.subr.mxu0 0.0
      %416 = vmatpush1.msra.mxu0 0.0
      %417 = vmatprep.subr.mxu0 0.0
      %418 = vmatpush1.msra.mxu0 0.0
      %419 = vmatprep.subr.mxu0 0.0
      %420 = vmatpush1.msra.mxu0 0.0
      %421 = vmatprep.mubr.f32.mxu0 0.0
      %422 = vmatmul.mubr.f32.gmra.mrb[0].mxu0 %v341
      %v423 = vpop.f32.mrb[0].mxu0
      %v424 = vadd.f32 0.0, %v423
      %v425 = vpop.f32.mrb[0].mxu0
      %v426 = vadd.f32 0.0, %v425
      %427 = vmatprep.mubr.f32.mxu0 0.0
      %428 = vmatmul.mubr.f32.gmra.mrb[0].mxu0 %v344
      %v429 = vpop.f32.mrb[0].mxu0
      %v430 = vadd.f32 0.0, %v429
      %v431 = vpop.f32.mrb[0].mxu0
      %v432 = vadd.f32 0.0, %v431
      %433 = vmatprep.mubr.f32.mxu0 0.0
      %434 = vmatmul.mubr.f32.gmra.mrb[0].mxu0 %v347
      %v435 = vpop.f32.mrb[0].mxu0
      %v436 = vadd.f32 0.0, %v435
      %v437 = vpop.f32.mrb[0].mxu0
      %v438 = vadd.f32 0.0, %v437
      %439 = vmatprep.mubr.f32.mxu0 0.0
      %440 = vmatmul.mubr.f32.gmra.mrb[0].mxu0 %v350
      %v441 = vpop.f32.mrb[0].mxu0
      %v442 = vadd.f32 0.0, %v441
      %v443 = vpop.f32.mrb[0].mxu0
      %v444 = vadd.f32 0.0, %v443
      %445 = vdwg.mxu0
      %447 = vset.pattern.permute.xlu0 0
      %448 = vperm.xlu0 %447, %v324
      %v449 = vpop.permute.xlu0 %448
      %452 = vset.pattern.permute.xlu0 0
      %453 = vperm.xlu0 %452, %v325
      %v454 = vpop.permute.xlu0 %453
      %457 = vset.pattern.permute.xlu0 0
      %458 = vperm.xlu0 %457, %v326
      %v459 = vpop.permute.xlu0 %458
      %462 = vset.pattern.permute.xlu0 0
      %463 = vperm.xlu0 %462, %v327
      %v464 = vpop.permute.xlu0 %463
      %v466 = vmul.f32 %v424, %v449
      %v467 = vmul.f32 %v426, %v449
      %v468 = vmul.f32 %v430, %v454
      %v469 = vmul.f32 %v432, %v454
      %v470 = vmul.f32 %v436, %v459
      %v471 = vmul.f32 %v438, %v459
      %v472 = vmul.f32 %v442, %v464
      %v473 = vmul.f32 %v444, %v464
      %475 = vset.pattern.permute.xlu0 0
      %476 = vperm.xlu0 %475, %v328
      %v477 = vpop.permute.xlu0 %476
      %480 = vset.pattern.permute.xlu0 0
      %481 = vperm.xlu0 %480, %v329
      %v482 = vpop.permute.xlu0 %481
      %485 = vset.pattern.permute.xlu0 0
      %486 = vperm.xlu0 %485, %v330
      %v487 = vpop.permute.xlu0 %486
      %490 = vset.pattern.permute.xlu0 0
      %491 = vperm.xlu0 %490, %v331
      %v492 = vpop.permute.xlu0 %491
      %v494 = vadd.f32 %v466, %v477
      %v495 = vadd.f32 %v467, %v477
      %v496 = vadd.f32 %v468, %v482
      %v497 = vadd.f32 %v469, %v482
      %v498 = vadd.f32 %v470, %v487
      %v499 = vadd.f32 %v471, %v487
      %v500 = vadd.f32 %v472, %v492
      %v501 = vadd.f32 %v473, %v492
      %v502 = vmax.f32 %v494, 0.0
      %v503 = vmax.f32 %v495, 0.0
      %v504 = vmax.f32 %v496, 0.0
      %v505 = vmax.f32 %v497, 0.0
      %v506 = vmax.f32 %v498, 0.0
      %v507 = vmax.f32 %v499, 0.0
      %v508 = vmax.f32 %v500, 0.0
      %v509 = vmax.f32 %v501, 0.0
      %vm510 = vcmask 261120
      %v512 = vsel %vm510, %v322, 0
      %v515 = vsel %vm510, %v323, 0
      %517 = vmatprep.subr.mxu0 %v503
      %518 = vmatpush1.msra.mxu0 %v502
      %519 = vmatprep.subr.mxu0 %v505
      %520 = vmatpush1.msra.mxu0 %v504
      %521 = vmatprep.subr.mxu0 %v507
      %522 = vmatpush1.msra.mxu0 %v506
      %523 = vmatprep.subr.mxu0 %v509
      %524 = vmatpush1.msra.mxu0 %v508
      %525 = vmatprep.subr.mxu0 0.0
      %526 = vmatpush1.msra.mxu0 0.0
      %527 = vmatprep.subr.mxu0 0.0
      %528 = vmatpush1.msra.mxu0 0.0
      %529 = vmatprep.subr.mxu0 0.0
      %530 = vmatpush1.msra.mxu0 0.0
      %531 = vmatprep.subr.mxu0 0.0
      %532 = vmatpush1.msra.mxu0 0.0
      %533 = vmatprep.subr.mxu0 0.0
      %534 = vmatpush1.msra.mxu0 0.0
      %535 = vmatprep.subr.mxu0 0.0
      %536 = vmatpush1.msra.mxu0 0.0
      %537 = vmatprep.subr.mxu0 0.0
      %538 = vmatpush1.msra.mxu0 0.0
      %539 = vmatprep.subr.mxu0 0.0
      %540 = vmatpush1.msra.mxu0 0.0
      %541 = vmatprep.subr.mxu0 0.0
      %542 = vmatpush1.msra.mxu0 0.0
      %543 = vmatprep.subr.mxu0 0.0
      %544 = vmatpush1.msra.mxu0 0.0
      %545 = vmatprep.subr.mxu0 0.0
      %546 = vmatpush1.msra.mxu0 0.0
      %547 = vmatprep.subr.mxu0 0.0
      %548 = vmatpush1.msra.mxu0 0.0
      %549 = vmatprep.subr.mxu0 0.0
      %550 = vmatpush1.msra.mxu0 0.0
      %551 = vmatprep.subr.mxu0 0.0
      %552 = vmatpush1.msra.mxu0 0.0
      %553 = vmatprep.subr.mxu0 0.0
      %554 = vmatpush1.msra.mxu0 0.0
      %555 = vmatprep.subr.mxu0 0.0
      %556 = vmatpush1.msra.mxu0 0.0
      %557 = vmatprep.subr.mxu0 0.0
      %558 = vmatpush1.msra.mxu0 0.0
      %559 = vmatprep.subr.mxu0 0.0
      %560 = vmatpush1.msra.mxu0 0.0
      %561 = vmatprep.subr.mxu0 0.0
      %562 = vmatpush1.msra.mxu0 0.0
      %563 = vmatprep.subr.mxu0 0.0
      %564 = vmatpush1.msra.mxu0 0.0
      %565 = vmatprep.subr.mxu0 0.0
      %566 = vmatpush1.msra.mxu0 0.0
      %567 = vmatprep.subr.mxu0 0.0
      %568 = vmatpush1.msra.mxu0 0.0
      %569 = vmatprep.subr.mxu0 0.0
      %570 = vmatpush1.msra.mxu0 0.0
      %571 = vmatprep.subr.mxu0 0.0
      %572 = vmatpush1.msra.mxu0 0.0
      %573 = vmatprep.subr.mxu0 0.0
      %574 = vmatpush1.msra.mxu0 0.0
      %575 = vmatprep.subr.mxu0 0.0
      %576 = vmatpush1.msra.mxu0 0.0
      %577 = vmatprep.subr.mxu0 0.0
      %578 = vmatpush1.msra.mxu0 0.0
      %579 = vmatprep.subr.mxu0 0.0
      %580 = vmatpush1.msra.mxu0 0.0
      %581 = vmatprep.mubr.f32.mxu0 0.0
      %582 = vmatmul.mubr.f32.gmra.mrb[0].mxu0 %v512
      %v583 = vpop.f32.mrb[0].mxu0
      %v584 = vadd.f32 0.0, %v583
      %v585 = vpop.f32.mrb[0].mxu0
      %v586 = vadd.f32 0.0, %v585
      %587 = vmatprep.mubr.f32.mxu0 0.0
      %588 = vmatmul.mubr.f32.gmra.mrb[0].mxu0 %v515
      %v589 = vpop.f32.mrb[0].mxu0
      %v590 = vadd.f32 0.0, %v589
      %v591 = vpop.f32.mrb[0].mxu0
      %v592 = vadd.f32 0.0, %v591
      %593 = vdwg.mxu0
      %595 = vset.pattern.permute.xlu0 0
      %596 = vperm.xlu0 %595, %v332
      %v597 = vpop.permute.xlu0 %596
      %600 = vset.pattern.permute.xlu0 0
      %601 = vperm.xlu0 %600, %v333
      %v602 = vpop.permute.xlu0 %601
      %v604 = vmul.f32 %v584, %v597
      %v605 = vmul.f32 %v586, %v597
      %v606 = vmul.f32 %v590, %v602
      %v607 = vmul.f32 %v592, %v602
      %609 = vset.pattern.permute.xlu0 0
      %610 = vperm.xlu0 %609, %v334
      %v611 = vpop.permute.xlu0 %610
      %614 = vset.pattern.permute.xlu0 0
      %615 = vperm.xlu0 %614, %v335
      %v616 = vpop.permute.xlu0 %615
      %v618 = vadd.f32 %v604, %v611
      %v619 = vadd.f32 %v605, %v611
      %v620 = vadd.f32 %v606, %v616
      %v621 = vadd.f32 %v607, %v616
      %622 = vst [vmem:[%s316] sm:$0xff] %v618
      %623 = vst [vmem:[%s316 + $0x8] sm:$0xff] %v619
      %624 = vst [vmem:[%s316 + $0x10] sm:$0xff] %v620
      %625 = vst [vmem:[%s316 + $0x18] sm:$0xff] %v621
      %s626 = smul.u32 2, %s23
      %p627 = scmp.lt.s32.totalorder %s22, 1
      %s628 = scalar_select %p627, %s22, 1
      %p629 = scmp.lt.s32.totalorder %s626, 1
      %s630 = scalar_select %p629, %s626, 1
      %s631 = smul.addr %s628, 4
      %s632 = sadd.s32 %s630, %s631
      %s633 = smul.addr %s632, 8
      %s634 = scalar_lea.vmem %s7, %s633
      // Predicated region
      $region49: #{mlp2d_forward.5} parent=47 // pred_check
        %p635 = pneg %p204
      $region50: #{mlp2d_forward.5} parent=47 // pred_check_branch
        %637 = sbr.rel (%p635) target = $region52
      $region51: #{mlp2d_forward.5} parent=47 // pred_region
        %s638 = smul.u32 2, %s23
      $region52: #{mlp2d_forward.5} parent=47 // pred_fallthru
        _
    $region48: #{mlp2d_forward.5} parent=5 // pred_fallthru
      _
    %p639 = scmp.le.s32.totalorder 2, %s13
    // Predicated region
    $region53: #{mlp2d_forward.5} parent=5 // pred_check
      %p640 = pneg %p639
    $region54: #{mlp2d_forward.5} parent=5 // pred_check_branch
      %642 = sbr.rel (%p640) target = $region56
    $region55: #{mlp2d_forward.5} parent=5 // pred_region
      %s643 = ssub.s32 %s13, 2
      // Predicated region
      $region57: #{mlp2d_forward.5} parent=55 // pred_check
        %p644 = pneg %p210
      $region58: #{mlp2d_forward.5} parent=55 // pred_check_branch
        %646 = sbr.rel (%p644) target = $region60
      $region59: #{mlp2d_forward.5} parent=55 // pred_region
        %s647 = smul.u32 2, %s25
        %p648 = scmp.lt.s32.totalorder %s24, 1
        %s649 = scalar_select %p648, %s24, 1
        %p650 = scmp.lt.s32.totalorder %s647, 1
        %s651 = scalar_select %p650, %s647, 1
        %s652 = smul.addr %s649, 4
        %s653 = sadd.s32 %s651, %s652
        %s654 = smul.addr %s653, 8
        %s655 = scalar_lea.vmem %s7, %s654
      $region60: #{mlp2d_forward.5} parent=55 // pred_fallthru
        _
    $region56: #{mlp2d_forward.5} parent=5 // pred_fallthru
      _
  $region6: #{mlp2d_forward.5} parent=0 // loop_footer
    %s17 = sadd.s32 1, %s13
  $region7: #{mlp2d_forward.5} parent=0 // loop_footer_branch
    %12 = sbr.rel target = $region3
  $region8: #{mlp2d_forward.5} parent=0 // loop_exit
    _

// kernel: mlp2d_forward.4
$region0: #{mlp2d_forward.4}
  #allocation0 [shape = 'u32[]', space=smem, size = 0x4, offset = 0x4, fixed_abs, tag = 'smem constant byte address 0x4 - core index']
  #allocation1 [shape = 'u32[144,128]{1,0:T(1,128)}', space=vmem, size = 0x12000, scoped, tag = 'internal scratch']
  %s0 = inlined_call_operand.vmem [shape: f32[2,4,256], index: 0, kind: input, shape index: {}]
  %s1 = inlined_call_operand.vmem [shape: f32[32,4], index: 1, kind: input, shape index: {}]
  %s2 = inlined_call_operand.vmem [shape: f32[32,1], index: 2, kind: input, shape index: {}]
  %s3 = inlined_call_operand.vmem [shape: f32[32,1], index: 3, kind: input, shape index: {}]
  %s4 = inlined_call_operand.vmem [shape: f32[16,32], index: 4, kind: input, shape index: {}]
  %s5 = inlined_call_operand.vmem [shape: f32[2,16,1], index: 5, kind: output, shape index: {0}]
  %s6 = inlined_call_operand.vmem [shape: f32[2,16,1], index: 6, kind: output, shape index: {1}]
  %7 = xla_tuple %s5, %s6
  %s8 = sld [smem:[#allocation0]]
  $region65: #{mlp2d_forward.4} parent=0
    _
  %s10 = ssub.s32 1, %s8
  %s11 = scalar_select 0, %s10, %s8
  loop: start=0, step=1, limit=4
  $region2: #{mlp2d_forward.4} parent=0 // loop_pre_header
    _
  $region3: #{mlp2d_forward.4} parent=0 // loop_header
    %s13 = sphi 0, %s17
    %p14 = scmp.ge.s32.totalorder %s13, 4
    %s20 = sphi 0, %s32
    %s21 = sphi 0, %s28
    %s22 = sphi 0, %s20
    %s23 = sphi 0, %s21
    %s24 = sphi 0, %s22
    %s25 = sphi 0, %s23
    %s37 = sphi 0, %s39
    %s40 = sphi 0, %s37
    %s41 = sphi 0, %s40
    %s57 = sphi 0, %s41
    %s61 = sphi 0, %s61
    %s63 = sphi 0, %s61
    %s64 = sphi 0, %s63
    %s78 = sphi 0, %s64
    %s82 = sphi 0, %s82
    %s84 = sphi 0, %s82
    %s85 = sphi 0, %s84
    %s99 = sphi 0, %s85
    %s103 = sphi 0, %s103
    %s105 = sphi 0, %s103
    %s106 = sphi 0, %s105
    %s120 = sphi 0, %s106
    %s124 = sphi 0, %s124
    %s126 = sphi 0, %s124
    %s127 = sphi 0, %s126
    %s141 = sphi 0, %s127
    %s147 = sphi 0, %s149
    %s150 = sphi 0, %s147
    %s151 = sphi 0, %s150
    %s167 = sphi 0, %s151
    %s173 = sphi 0, %s175
    %s176 = sphi 0, %s173
    %s177 = sphi 0, %s176
    %s193 = sphi 0, %s177
  $region4: #{mlp2d_forward.4} parent=0 // loop_header_branch
    %16 = sbr.rel (%p14) target = $region8
  $region5: #{mlp2d_forward.4} parent=0 // loop_body
    %s18 = ssub.s32 %s13, 1
    %s19 = ssub.s32 %s13, 2
    %s26 = sadd.s32 1, %s21
    %p27 = scmp.ge.s32.totalorder %s26, 1
    %s28 = scalar_select %p27, 0, %s26
    %s29 = sadd.s32 1, %s20
    %s30 = scalar_select %p27, %s29, %s20
    %p31 = scmp.ge.s32.totalorder %s30, 2
    %s32 = scalar_select %p31, 0, %s30
    %s33 = ssub.s32 %s20, %s32
    %s34 = ssub.s32 %s21, %s28
    %s35 = sor.u32 %s33, %s34
    %p36 = scmp.eq.s32.totalorder %s35, 0
    %s38 = sadd.s32 %s37, 1
    %s39 = scalar_select %p36, %s37, %s38
    %p42 = pneg %p36
    %p43 = scmp.eq.s32.totalorder %s13, 1
    %p44 = por %p42, %p43
    %p45 = scmp.ne.s32.totalorder %s37, %s40
    %p46 = scmp.eq.s32.totalorder %s13, 0
    %p47 = por %p45, %p46
    %p48 = scmp.ne.s32.totalorder %s37, %s40
    %p49 = scmp.eq.s32.totalorder %s18, 1
    %p50 = por %p48, %p49
    %p51 = scmp.ne.s32.totalorder %s40, %s41
    %p52 = scmp.eq.s32.totalorder %s18, 0
    %p53 = por %p51, %p52
    %p54 = scmp.ne.s32.totalorder %s40, %s41
    %p55 = scmp.eq.s32.totalorder %s19, 1
    %p56 = por %p54, %p55
    %p58 = scmp.ne.s32.totalorder %s41, %s57
    %p59 = scmp.eq.s32.totalorder %s19, 0
    %p60 = por %p58, %p59
    %s62 = sadd.s32 %s61, 1
    %p65 = scmp.eq.s32.totalorder %s13, 1
    %p66 = scmp.ne.s32.totalorder %s61, %s63
    %p67 = scmp.eq.s32.totalorder %s13, 0
    %p68 = por %p66, %p67
    %p69 = scmp.ne.s32.totalorder %s61, %s63
    %p70 = scmp.eq.s32.totalorder %s18, 1
    %p71 = por %p69, %p70
    %p72 = scmp.ne.s32.totalorder %s63, %s64
    %p73 = scmp.eq.s32.totalorder %s18, 0
    %p74 = por %p72, %p73
    %p75 = scmp.ne.s32.totalorder %s63, %s64
    %p76 = scmp.eq.s32.totalorder %s19, 1
    %p77 = por %p75, %p76
    %p79 = scmp.ne.s32.totalorder %s64, %s78
    %p80 = scmp.eq.s32.totalorder %s19, 0
    %p81 = por %p79, %p80
    %s83 = sadd.s32 %s82, 1
    %p86 = scmp.eq.s32.totalorder %s13, 1
    %p87 = scmp.ne.s32.totalorder %s82, %s84
    %p88 = scmp.eq.s32.totalorder %s13, 0
    %p89 = por %p87, %p88
    %p90 = scmp.ne.s32.totalorder %s82, %s84
    %p91 = scmp.eq.s32.totalorder %s18, 1
    %p92 = por %p90, %p91
    %p93 = scmp.ne.s32.totalorder %s84, %s85
    %p94 = scmp.eq.s32.totalorder %s18, 0
    %p95 = por %p93, %p94
    %p96 = scmp.ne.s32.totalorder %s84, %s85
    %p97 = scmp.eq.s32.totalorder %s19, 1
    %p98 = por %p96, %p97
    %p100 = scmp.ne.s32.totalorder %s85, %s99
    %p101 = scmp.eq.s32.totalorder %s19, 0
    %p102 = por %p100, %p101
    %s104 = sadd.s32 %s103, 1
    %p107 = scmp.eq.s32.totalorder %s13, 1
    %p108 = scmp.ne.s32.totalorder %s103, %s105
    %p109 = scmp.eq.s32.totalorder %s13, 0
    %p110 = por %p108, %p109
    %p111 = scmp.ne.s32.totalorder %s103, %s105
    %p112 = scmp.eq.s32.totalorder %s18, 1
    %p113 = por %p111, %p112
    %p114 = scmp.ne.s32.totalorder %s105, %s106
    %p115 = scmp.eq.s32.totalorder %s18, 0
    %p116 = por %p114, %p115
    %p117 = scmp.ne.s32.totalorder %s105, %s106
    %p118 = scmp.eq.s32.totalorder %s19, 1
    %p119 = por %p117, %p118
    %p121 = scmp.ne.s32.totalorder %s106, %s120
    %p122 = scmp.eq.s32.totalorder %s19, 0
    %p123 = por %p121, %p122
    %s125 = sadd.s32 %s124, 1
    %p128 = scmp.eq.s32.totalorder %s13, 1
    %p129 = scmp.ne.s32.totalorder %s124, %s126
    %p130 = scmp.eq.s32.totalorder %s13, 0
    %p131 = por %p129, %p130
    %p132 = scmp.ne.s32.totalorder %s124, %s126
    %p133 = scmp.eq.s32.totalorder %s18, 1
    %p134 = por %p132, %p133
    %p135 = scmp.ne.s32.totalorder %s126, %s127
    %p136 = scmp.eq.s32.totalorder %s18, 0
    %p137 = por %p135, %p136
    %p138 = scmp.ne.s32.totalorder %s126, %s127
    %p139 = scmp.eq.s32.totalorder %s19, 1
    %p140 = por %p138, %p139
    %p142 = scmp.ne.s32.totalorder %s127, %s141
    %p143 = scmp.eq.s32.totalorder %s19, 0
    %p144 = por %p142, %p143
    %s145 = ssub.s32 %s20, %s32
    %p146 = scmp.eq.s32.totalorder %s145, 0
    %s148 = sadd.s32 %s147, 1
    %s149 = scalar_select %p146, %s147, %s148
    %p152 = pneg %p146
    %p153 = scmp.eq.s32.totalorder %s13, 1
    %p154 = por %p152, %p153
    %p155 = scmp.ne.s32.totalorder %s147, %s150
    %p156 = scmp.eq.s32.totalorder %s13, 0
    %p157 = por %p155, %p156
    %p158 = scmp.ne.s32.totalorder %s147, %s150
    %p159 = scmp.eq.s32.totalorder %s18, 1
    %p160 = por %p158, %p159
    %p161 = scmp.ne.s32.totalorder %s150, %s151
    %p162 = scmp.eq.s32.totalorder %s18, 0
    %p163 = por %p161, %p162
    %p164 = scmp.ne.s32.totalorder %s150, %s151
    %p165 = scmp.eq.s32.totalorder %s19, 1
    %p166 = por %p164, %p165
    %p168 = scmp.ne.s32.totalorder %s151, %s167
    %p169 = scmp.eq.s32.totalorder %s19, 0
    %p170 = por %p168, %p169
    %s171 = ssub.s32 %s20, %s32
    %p172 = scmp.eq.s32.totalorder %s171, 0
    %s174 = sadd.s32 %s173, 1
    %s175 = scalar_select %p172, %s173, %s174
    %p178 = pneg %p172
    %p179 = scmp.eq.s32.totalorder %s13, 1
    %p180 = por %p178, %p179
    %p181 = scmp.ne.s32.totalorder %s173, %s176
    %p182 = scmp.eq.s32.totalorder %s13, 0
    %p183 = por %p181, %p182
    %p184 = scmp.ne.s32.totalorder %s173, %s176
    %p185 = scmp.eq.s32.totalorder %s18, 1
    %p186 = por %p184, %p185
    %p187 = scmp.ne.s32.totalorder %s176, %s177
    %p188 = scmp.eq.s32.totalorder %s18, 0
    %p189 = por %p187, %p188
    %p190 = scmp.ne.s32.totalorder %s176, %s177
    %p191 = scmp.eq.s32.totalorder %s19, 1
    %p192 = por %p190, %p191
    %p194 = scmp.ne.s32.totalorder %s177, %s193
    %p195 = scmp.eq.s32.totalorder %s19, 0
    %p196 = por %p194, %p195
    %p197 = scmp.le.s32.totalorder 1, %s13
    %p198 = scmp.lt.s32.totalorder %s13, 3
    %p199 = pnand %p197, %p198
    %p200 = pneg %p199
    // Predicated region
    $region9: #{mlp2d_forward.4} parent=5 // pred_check
      _
    $region10: #{mlp2d_forward.4} parent=5 // pred_check_branch
      %202 = sbr.rel (%p199) target = $region12
    $region11: #{mlp2d_forward.4} parent=5 // pred_region
      %s203 = ssub.s32 %s13, 1
      // Predicated region
      $region13: #{mlp2d_forward.4} parent=11 // pred_check
        %p204 = pneg %p74
      $region14: #{mlp2d_forward.4} parent=11 // pred_check_branch
        %206 = sbr.rel (%p204) target = $region16
      $region15: #{mlp2d_forward.4} parent=11 // pred_region
        _
      $region16: #{mlp2d_forward.4} parent=11 // pred_fallthru
        _
      // Predicated region
      $region17: #{mlp2d_forward.4} parent=11 // pred_check
        %p207 = pneg %p95
      $region18: #{mlp2d_forward.4} parent=11 // pred_check_branch
        %209 = sbr.rel (%p207) target = $region20
      $region19: #{mlp2d_forward.4} parent=11 // pred_region
        _
      $region20: #{mlp2d_forward.4} parent=11 // pred_fallthru
        _
      // Predicated region
      $region21: #{mlp2d_forward.4} parent=11 // pred_check
        %p210 = pneg %p116
      $region22: #{mlp2d_forward.4} parent=11 // pred_check_branch
        %212 = sbr.rel (%p210) target = $region24
      $region23: #{mlp2d_forward.4} parent=11 // pred_region
        _
      $region24: #{mlp2d_forward.4} parent=11 // pred_fallthru
        _
      // Predicated region
      $region25: #{mlp2d_forward.4} parent=11 // pred_check
        %p213 = pneg %p137
      $region26: #{mlp2d_forward.4} parent=11 // pred_check_branch
        %215 = sbr.rel (%p213) target = $region28
      $region27: #{mlp2d_forward.4} parent=11 // pred_region
        _
      $region28: #{mlp2d_forward.4} parent=11 // pred_fallthru
        _
    $region12: #{mlp2d_forward.4} parent=5 // pred_fallthru
      _
    %p216 = scmp.lt.s32.totalorder %s13, 2
    // Predicated region
    $region29: #{mlp2d_forward.4} parent=5 // pred_check
      %p217 = pneg %p216
    $region30: #{mlp2d_forward.4} parent=5 // pred_check_branch
      %219 = sbr.rel (%p217) target = $region32
    $region31: #{mlp2d_forward.4} parent=5 // pred_region
      // Predicated region
      $region33: #{mlp2d_forward.4} parent=31 // pred_check
        %p220 = pneg %p47
      $region34: #{mlp2d_forward.4} parent=31 // pred_check_branch
        %222 = sbr.rel (%p220) target = $region36
      $region35: #{mlp2d_forward.4} parent=31 // pred_region
        %s223 = smul.u32 2, %s21
        %p224 = scmp.lt.s32.totalorder %s20, 1
        %s225 = scalar_select %p224, %s20, 1
        %p226 = scmp.lt.s32.totalorder %s223, 1
        %s227 = scalar_select %p226, %s223, 1
        %s228 = smul.addr %s225, 2
        %s229 = sadd.s32 %s227, %s228
        %s230 = smul.addr %s229, 4
        %s231 = scalar_lea.vmem %s0, %s230
        %s232 = smul.u32 2, %s21
      $region36: #{mlp2d_forward.4} parent=31 // pred_fallthru
        _
    $region32: #{mlp2d_forward.4} parent=5 // pred_fallthru
      _
    %p233 = scmp.le.s32.totalorder 1, %s13
    %p234 = scmp.lt.s32.totalorder %s13, 3
    %p235 = pnand %p233, %p234
    %p236 = pneg %p235
    // Predicated region
    $region37: #{mlp2d_forward.4} parent=5 // pred_check
      _
    $region38: #{mlp2d_forward.4} parent=5 // pred_check_branch
      %238 = sbr.rel (%p235) target = $region40
    $region39: #{mlp2d_forward.4} parent=5 // pred_region
      %s239 = ssub.s32 %s13, 1
      %s240 = smul.u32 2, %s23
      %p241 = scmp.lt.s32.totalorder %s22, 1
      %s242 = scalar_select %p241, %s22, 1
      %p243 = scmp.lt.s32.totalorder %s240, 1
      %s244 = scalar_select %p243, %s240, 1
      %s245 = smul.addr %s242, 2
      %s246 = sadd.s32 %s244, %s245
      %s247 = smul.addr %s246, 4
      %s248 = scalar_lea.vmem %s0, %s247
      %p249 = pneg %p53
      %p250 = pneg %p50
      %p251 = pneg %p74
      %p252 = pneg %p71
      %p253 = pneg %p95
      %p254 = pneg %p92
      %p255 = pneg %p116
      %p256 = pneg %p113
      %p257 = pneg %p137
      %p258 = pneg %p134
      %p259 = pneg %p163
      %p260 = pneg %p160
      %p261 = scmp.lt.s32.totalorder %s22, 1
      %s262 = scalar_select %p261, %s22, 1
      %s263 = smul.addr %s262, 2
      %s264 = smul.addr %s263, 8
      %s265 = scalar_lea.vmem %s5, %s264
      %p266 = pneg %p189
      %p267 = pneg %p186
      %p268 = scmp.lt.s32.totalorder %s22, 1
      %s269 = scalar_select %p268, %s22, 1
      %s270 = smul.addr %s269, 2
      %s271 = smul.addr %s270, 8
      %s272 = scalar_lea.vmem %s6, %s271
      %s273 = smul.u32 2, %s23
      %p274 = scmp.lt.s32.totalorder %s22, 1
      %s275 = scalar_select %p274, %s22, 1
      %p276 = scmp.lt.s32.totalorder %s273, 1
      %s277 = scalar_select %p276, %s273, 1
      %s278 = smul.addr %s275, 2
      %s279 = sadd.s32 %s277, %s278
      %s280 = smul.addr %s279, 4
      %s281 = scalar_lea.vmem %s0, %s280
      %s282 = smul.u32 2, %s23
      %p283 = scmp.lt.s32.totalorder %s22, 1
      %s284 = scalar_select %p283, %s22, 1
      %s285 = smul.addr %s284, 2
      %s286 = smul.addr %s285, 8
      %s287 = scalar_lea.vmem %s5, %s286
      %p288 = scmp.lt.s32.totalorder %s22, 1
      %s289 = scalar_select %p288, %s22, 1
      %s290 = smul.addr %s289, 2
      %s291 = smul.addr %s290, 8
      %s292 = scalar_lea.vmem %s6, %s291
      %p293 = scmp.eq.s32.totalorder %s23, 0
      // Predicated region
      $region41: #{mlp2d_forward.4} parent=39 // pred_check
        %p294 = pneg %p293
      $region42: #{mlp2d_forward.4} parent=39 // pred_check_branch
        %296 = sbr.rel (%p294) target = $region44
      $region43: #{mlp2d_forward.4} parent=39 // pred_region
        %vm297 = vcmask 7168
        %298 = vst.msk [vmem:[%s287] sm:$0xff] %vm297, 0.0
        %299 = vst.msk [vmem:[%s287 + $0x8] sm:$0xff] %vm297, 0.0
        %300 = vst.msk [vmem:[%s292] sm:$0xff] %vm297, 0.0
        %301 = vst.msk [vmem:[%s292 + $0x8] sm:$0xff] %vm297, 0.0
      $region44: #{mlp2d_forward.4} parent=39 // pred_fallthru
        _
      %v302 = vld [vmem:[%s1] sm:$0xff]
      %v303 = vld [vmem:[%s1 + $0x8] sm:$0xff]
      %v304 = vld [vmem:[%s1 + $0x10] sm:$0xff]
      %v305 = vld [vmem:[%s1 + $0x18] sm:$0xff]
      %v306 = vld [vmem:[%s4] sm:$0xff]
      %v307 = vld [vmem:[%s4 + $0x8] sm:$0xff]
      %v308 = vld [vmem:[%s2] sm:$0xff]
      %v309 = vld [vmem:[%s2 + $0x8] sm:$0xff]
      %v310 = vld [vmem:[%s2 + $0x10] sm:$0xff]
      %v311 = vld [vmem:[%s2 + $0x18] sm:$0xff]
      %v312 = vld [vmem:[%s3] sm:$0xff]
      %v313 = vld [vmem:[%s3 + $0x8] sm:$0xff]
      %v314 = vld [vmem:[%s3 + $0x10] sm:$0xff]
      %v315 = vld [vmem:[%s3 + $0x18] sm:$0xff]
      %v316 = vld [vmem:[%s281] sm:$0xff]
      %v318 = vcombine.high %v316, %v316
      %vm319 = vcmask 31744
      %v321 = vsel %vm319, %v302, 0
      %v324 = vsel %vm319, %v303, 0
      %v327 = vsel %vm319, %v304, 0
      %v330 = vsel %vm319, %v305, 0
      %vm332 = vcmask 1043456
      %v333 = vsel %vm332, %v316, 0
      %v335 = vsel %vm332, %v318, 0
      %337 = vmatprep.subr.mxu0 %v335
      %338 = vmatpush1.msra.mxu0 %v333
      %339 = vmatprep.subr.mxu0 0.0
      %340 = vmatpush1.msra.mxu0 0.0
      %341 = vmatprep.subr.mxu0 0.0
      %342 = vmatpush1.msra.mxu0 0.0
      %343 = vmatprep.subr.mxu0 0.0
      %344 = vmatpush1.msra.mxu0 0.0
      %345 = vmatprep.subr.mxu0 0.0
      %346 = vmatpush1.msra.mxu0 0.0
      %347 = vmatprep.subr.mxu0 0.0
      %348 = vmatpush1.msra.mxu0 0.0
      %349 = vmatprep.subr.mxu0 0.0
      %350 = vmatpush1.msra.mxu0 0.0
      %351 = vmatprep.subr.mxu0 0.0
      %352 = vmatpush1.msra.mxu0 0.0
      %353 = vmatprep.subr.mxu0 0.0
      %354 = vmatpush1.msra.mxu0 0.0
      %355 = vmatprep.subr.mxu0 0.0
      %356 = vmatpush1.msra.mxu0 0.0
      %357 = vmatprep.subr.mxu0 0.0
      %358 = vmatpush1.msra.mxu0 0.0
      %359 = vmatprep.subr.mxu0 0.0
      %360 = vmatpush1.msra.mxu0 0.0
      %361 = vmatprep.subr.mxu0 0.0
      %362 = vmatpush1.msra.mxu0 0.0
      %363 = vmatprep.subr.mxu0 0.0
      %364 = vmatpush1.msra.mxu0 0.0
      %365 = vmatprep.subr.mxu0 0.0
      %366 = vmatpush1.msra.mxu0 0.0
      %367 = vmatprep.subr.mxu0 0.0
      %368 = vmatpush1.msra.mxu0 0.0
      %369 = vmatprep.subr.mxu0 0.0
      %370 = vmatpush1.msra.mxu0 0.0
      %371 = vmatprep.subr.mxu0 0.0
      %372 = vmatpush1.msra.mxu0 0.0
      %373 = vmatprep.subr.mxu0 0.0
      %374 = vmatpush1.msra.mxu0 0.0
      %375 = vmatprep.subr.mxu0 0.0
      %376 = vmatpush1.msra.mxu0 0.0
      %377 = vmatprep.subr.mxu0 0.0
      %378 = vmatpush1.msra.mxu0 0.0
      %379 = vmatprep.subr.mxu0 0.0
      %380 = vmatpush1.msra.mxu0 0.0
      %381 = vmatprep.subr.mxu0 0.0
      %382 = vmatpush1.msra.mxu0 0.0
      %383 = vmatprep.subr.mxu0 0.0
      %384 = vmatpush1.msra.mxu0 0.0
      %385 = vmatprep.subr.mxu0 0.0
      %386 = vmatpush1.msra.mxu0 0.0
      %387 = vmatprep.subr.mxu0 0.0
      %388 = vmatpush1.msra.mxu0 0.0
      %389 = vmatprep.subr.mxu0 0.0
      %390 = vmatpush1.msra.mxu0 0.0
      %391 = vmatprep.subr.mxu0 0.0
      %392 = vmatpush1.msra.mxu0 0.0
      %393 = vmatprep.subr.mxu0 0.0
      %394 = vmatpush1.msra.mxu0 0.0
      %395 = vmatprep.subr.mxu0 0.0
      %396 = vmatpush1.msra.mxu0 0.0
      %397 = vmatprep.subr.mxu0 0.0
      %398 = vmatpush1.msra.mxu0 0.0
      %399 = vmatprep.subr.mxu0 0.0
      %400 = vmatpush1.msra.mxu0 0.0
      %401 = vmatprep.mubr.f32.mxu0 0.0
      %402 = vmatmul.mubr.f32.gmra.mrb[0].mxu0 %v321
      %v403 = vpop.f32.mrb[0].mxu0
      %v404 = vadd.f32 0.0, %v403
      %v405 = vpop.f32.mrb[0].mxu0
      %v406 = vadd.f32 0.0, %v405
      %407 = vmatprep.mubr.f32.mxu0 0.0
      %408 = vmatmul.mubr.f32.gmra.mrb[0].mxu0 %v324
      %v409 = vpop.f32.mrb[0].mxu0
      %v410 = vadd.f32 0.0, %v409
      %v411 = vpop.f32.mrb[0].mxu0
      %v412 = vadd.f32 0.0, %v411
      %413 = vmatprep.mubr.f32.mxu0 0.0
      %414 = vmatmul.mubr.f32.gmra.mrb[0].mxu0 %v327
      %v415 = vpop.f32.mrb[0].mxu0
      %v416 = vadd.f32 0.0, %v415
      %v417 = vpop.f32.mrb[0].mxu0
      %v418 = vadd.f32 0.0, %v417
      %419 = vmatprep.mubr.f32.mxu0 0.0
      %420 = vmatmul.mubr.f32.gmra.mrb[0].mxu0 %v330
      %v421 = vpop.f32.mrb[0].mxu0
      %v422 = vadd.f32 0.0, %v421
      %v423 = vpop.f32.mrb[0].mxu0
      %v424 = vadd.f32 0.0, %v423
      %425 = vdwg.mxu0
      %427 = vset.pattern.permute.xlu0 0
      %428 = vperm.xlu0 %427, %v308
      %v429 = vpop.permute.xlu0 %428
      %432 = vset.pattern.permute.xlu0 0
      %433 = vperm.xlu0 %432, %v309
      %v434 = vpop.permute.xlu0 %433
      %437 = vset.pattern.permute.xlu0 0
      %438 = vperm.xlu0 %437, %v310
      %v439 = vpop.permute.xlu0 %438
      %442 = vset.pattern.permute.xlu0 0
      %443 = vperm.xlu0 %442, %v311
      %v444 = vpop.permute.xlu0 %443
      %v446 = vmul.f32 %v404, %v429
      %v447 = vmul.f32 %v406, %v429
      %v448 = vmul.f32 %v410, %v434
      %v449 = vmul.f32 %v412, %v434
      %v450 = vmul.f32 %v416, %v439
      %v451 = vmul.f32 %v418, %v439
      %v452 = vmul.f32 %v422, %v444
      %v453 = vmul.f32 %v424, %v444
      %455 = vset.pattern.permute.xlu0 0
      %456 = vperm.xlu0 %455, %v312
      %v457 = vpop.permute.xlu0 %456
      %460 = vset.pattern.permute.xlu0 0
      %461 = vperm.xlu0 %460, %v313
      %v462 = vpop.permute.xlu0 %461
      %465 = vset.pattern.permute.xlu0 0
      %466 = vperm.xlu0 %465, %v314
      %v467 = vpop.permute.xlu0 %466
      %470 = vset.pattern.permute.xlu0 0
      %471 = vperm.xlu0 %470, %v315
      %v472 = vpop.permute.xlu0 %471
      %v474 = vadd.f32 %v446, %v457
      %v475 = vadd.f32 %v447, %v457
      %v476 = vadd.f32 %v448, %v462
      %v477 = vadd.f32 %v449, %v462
      %v478 = vadd.f32 %v450, %v467
      %v479 = vadd.f32 %v451, %v467
      %v480 = vadd.f32 %v452, %v472
      %v481 = vadd.f32 %v453, %v472
      %v482 = vmax.f32 %v474, 0.0
      %v483 = vmax.f32 %v475, 0.0
      %v484 = vmax.f32 %v476, 0.0
      %v485 = vmax.f32 %v477, 0.0
      %v486 = vmax.f32 %v478, 0.0
      %v487 = vmax.f32 %v479, 0.0
      %v488 = vmax.f32 %v480, 0.0
      %v489 = vmax.f32 %v481, 0.0
      %vm490 = vcmask 261120
      %v492 = vsel %vm490, %v306, 0
      %v495 = vsel %vm490, %v307, 0
      %497 = vmatprep.subr.mxu0 %v483
      %498 = vmatpush1.msra.mxu0 %v482
      %499 = vmatprep.subr.mxu0 %v485
      %500 = vmatpush1.msra.mxu0 %v484
      %501 = vmatprep.subr.mxu0 %v487
      %502 = vmatpush1.msra.mxu0 %v486
      %503 = vmatprep.subr.mxu0 %v489
      %504 = vmatpush1.msra.mxu0 %v488
      %505 = vmatprep.subr.mxu0 0.0
      %506 = vmatpush1.msra.mxu0 0.0
      %507 = vmatprep.subr.mxu0 0.0
      %508 = vmatpush1.msra.mxu0 0.0
      %509 = vmatprep.subr.mxu0 0.0
      %510 = vmatpush1.msra.mxu0 0.0
      %511 = vmatprep.subr.mxu0 0.0
      %512 = vmatpush1.msra.mxu0 0.0
      %513 = vmatprep.subr.mxu0 0.0
      %514 = vmatpush1.msra.mxu0 0.0
      %515 = vmatprep.subr.mxu0 0.0
      %516 = vmatpush1.msra.mxu0 0.0
      %517 = vmatprep.subr.mxu0 0.0
      %518 = vmatpush1.msra.mxu0 0.0
      %519 = vmatprep.subr.mxu0 0.0
      %520 = vmatpush1.msra.mxu0 0.0
      %521 = vmatprep.subr.mxu0 0.0
      %522 = vmatpush1.msra.mxu0 0.0
      %523 = vmatprep.subr.mxu0 0.0
      %524 = vmatpush1.msra.mxu0 0.0
      %525 = vmatprep.subr.mxu0 0.0
      %526 = vmatpush1.msra.mxu0 0.0
      %527 = vmatprep.subr.mxu0 0.0
      %528 = vmatpush1.msra.mxu0 0.0
      %529 = vmatprep.subr.mxu0 0.0
      %530 = vmatpush1.msra.mxu0 0.0
      %531 = vmatprep.subr.mxu0 0.0
      %532 = vmatpush1.msra.mxu0 0.0
      %533 = vmatprep.subr.mxu0 0.0
      %534 = vmatpush1.msra.mxu0 0.0
      %535 = vmatprep.subr.mxu0 0.0
      %536 = vmatpush1.msra.mxu0 0.0
      %537 = vmatprep.subr.mxu0 0.0
      %538 = vmatpush1.msra.mxu0 0.0
      %539 = vmatprep.subr.mxu0 0.0
      %540 = vmatpush1.msra.mxu0 0.0
      %541 = vmatprep.subr.mxu0 0.0
      %542 = vmatpush1.msra.mxu0 0.0
      %543 = vmatprep.subr.mxu0 0.0
      %544 = vmatpush1.msra.mxu0 0.0
      %545 = vmatprep.subr.mxu0 0.0
      %546 = vmatpush1.msra.mxu0 0.0
      %547 = vmatprep.subr.mxu0 0.0
      %548 = vmatpush1.msra.mxu0 0.0
      %549 = vmatprep.subr.mxu0 0.0
      %550 = vmatpush1.msra.mxu0 0.0
      %551 = vmatprep.subr.mxu0 0.0
      %552 = vmatpush1.msra.mxu0 0.0
      %553 = vmatprep.subr.mxu0 0.0
      %554 = vmatpush1.msra.mxu0 0.0
      %555 = vmatprep.subr.mxu0 0.0
      %556 = vmatpush1.msra.mxu0 0.0
      %557 = vmatprep.subr.mxu0 0.0
      %558 = vmatpush1.msra.mxu0 0.0
      %559 = vmatprep.subr.mxu0 0.0
      %560 = vmatpush1.msra.mxu0 0.0
      %561 = vmatprep.mubr.f32.mxu0 0.0
      %562 = vmatmul.mubr.f32.gmra.mrb[0].mxu0 %v492
      %v563 = vpop.f32.mrb[0].mxu0
      %v564 = vadd.f32 0.0, %v563
      %v565 = vpop.f32.mrb[0].mxu0
      %v566 = vadd.f32 0.0, %v565
      %567 = vmatprep.mubr.f32.mxu0 0.0
      %568 = vmatmul.mubr.f32.gmra.mrb[0].mxu0 %v495
      %v569 = vpop.f32.mrb[0].mxu0
      %v570 = vadd.f32 0.0, %v569
      %v571 = vpop.f32.mrb[0].mxu0
      %v572 = vadd.f32 0.0, %v571
      %573 = vdwg.mxu0
      %v574 = vld [vmem:[%s287] sm:$0xff]
      %v575 = vld [vmem:[%s287 + $0x8] sm:$0xff]
      %v576 = vadd.f32 %v564, %v566
      %577 = vadd.xlane.f32.xlu0 %v576
      %v578 = vpop.xlane.xlu0 %577
      %v579 = vadd.f32 %v570, %v572
      %580 = vadd.xlane.f32.xlu0 %v579
      %v581 = vpop.xlane.xlu0 %580
      %v582 = vadd.f32 %v574, %v578
      %v583 = vadd.f32 %v575, %v581
      %vm584 = vcmask 7168
      %585 = vst.msk [vmem:[%s287] sm:$0xff] %vm584, %v582
      %586 = vst.msk [vmem:[%s287 + $0x8] sm:$0xff] %vm584, %v583
      %v587 = vld [vmem:[%s292] sm:$0xff]
      %v588 = vld [vmem:[%s292 + $0x8] sm:$0xff]
      %v589 = vmul.f32 %v564, %v564
      %v590 = vmul.f32 %v566, %v566
      %v591 = vmul.f32 %v570, %v570
      %v592 = vmul.f32 %v572, %v572
      %v593 = vadd.f32 %v589, %v590
      %594 = vadd.xlane.f32.xlu0 %v593
      %v595 = vpop.xlane.xlu0 %594
      %v596 = vadd.f32 %v591, %v592
      %597 = vadd.xlane.f32.xlu0 %v596
      %v598 = vpop.xlane.xlu0 %597
      %v599 = vadd.f32 %v587, %v595
      %v600 = vadd.f32 %v588, %v598
      %601 = vst.msk [vmem:[%s292] sm:$0xff] %vm584, %v599
      %602 = vst.msk [vmem:[%s292 + $0x8] sm:$0xff] %vm584, %v600
      %p603 = scmp.lt.s32.totalorder %s22, 1
      %s604 = scalar_select %p603, %s22, 1
      %s605 = smul.addr %s604, 2
      %s606 = smul.addr %s605, 8
      %s607 = scalar_lea.vmem %s5, %s606
      %p608 = scmp.lt.s32.totalorder %s22, 1
      %s609 = scalar_select %p608, %s22, 1
      %s610 = smul.addr %s609, 2
      %s611 = smul.addr %s610, 8
      %s612 = scalar_lea.vmem %s6, %s611
      // Predicated region
      $region45: #{mlp2d_forward.4} parent=39 // pred_check
        %p613 = pneg %p160
      $region46: #{mlp2d_forward.4} parent=39 // pred_check_branch
        %615 = sbr.rel (%p613) target = $region48
      $region47: #{mlp2d_forward.4} parent=39 // pred_region
        _
      $region48: #{mlp2d_forward.4} parent=39 // pred_fallthru
        _
      // Predicated region
      $region49: #{mlp2d_forward.4} parent=39 // pred_check
        %p616 = pneg %p186
      $region50: #{mlp2d_forward.4} parent=39 // pred_check_branch
        %618 = sbr.rel (%p616) target = $region52
      $region51: #{mlp2d_forward.4} parent=39 // pred_region
        _
      $region52: #{mlp2d_forward.4} parent=39 // pred_fallthru
        _
    $region40: #{mlp2d_forward.4} parent=5 // pred_fallthru
      _
    %p619 = scmp.le.s32.totalorder 2, %s13
    // Predicated region
    $region53: #{mlp2d_forward.4} parent=5 // pred_check
      %p620 = pneg %p619
    $region54: #{mlp2d_forward.4} parent=5 // pred_check_branch
      %622 = sbr.rel (%p620) target = $region56
    $region55: #{mlp2d_forward.4} parent=5 // pred_region
      %s623 = ssub.s32 %s13, 2
      // Predicated region
      $region57: #{mlp2d_forward.4} parent=55 // pred_check
        %p624 = pneg %p166
      $region58: #{mlp2d_forward.4} parent=55 // pred_check_branch
        %626 = sbr.rel (%p624) target = $region60
      $region59: #{mlp2d_forward.4} parent=55 // pred_region
        %p627 = scmp.lt.s32.totalorder %s24, 1
        %s628 = scalar_select %p627, %s24, 1
        %s629 = smul.addr %s628, 2
        %s630 = smul.addr %s629, 8
        %s631 = scalar_lea.vmem %s5, %s630
      $region60: #{mlp2d_forward.4} parent=55 // pred_fallthru
        _
      // Predicated region
      $region61: #{mlp2d_forward.4} parent=55 // pred_check
        %p632 = pneg %p192
      $region62: #{mlp2d_forward.4} parent=55 // pred_check_branch
        %634 = sbr.rel (%p632) target = $region64
      $region63: #{mlp2d_forward.4} parent=55 // pred_region
        %p635 = scmp.lt.s32.totalorder %s24, 1
        %s636 = scalar_select %p635, %s24, 1
        %s637 = smul.addr %s636, 2
        %s638 = smul.addr %s637, 8
        %s639 = scalar_lea.vmem %s6, %s638
      $region64: #{mlp2d_forward.4} parent=55 // pred_fallthru
        _
    $region56: #{mlp2d_forward.4} parent=5 // pred_fallthru
      _
  $region6: #{mlp2d_forward.4} parent=0 // loop_footer
    %s17 = sadd.s32 1, %s13
  $region7: #{mlp2d_forward.4} parent=0 // loop_footer_branch
    %12 = sbr.rel target = $region3
  $region8: #{mlp2d_forward.4} parent=0 // loop_exit
    _

</llo_original>
